<compile_context>
chip_gen: v7x
topology: tpu7x:2x2x1
jax: 0.10.0
libtpu: 0.0.40
codegen_flags: <defaults>
</compile_context>

<pallas_src>
import functools

import jax
import jax.numpy as jnp
import numpy as np
from jax.experimental import pallas as pl
from jax.experimental.pallas import tpu as pltpu

EPS = 1e-10
THETA_CLAMP_MAX = 1.0e6

# Lanczos (g=7, n=9) constants for lgamma(z+1) = 0.5*log(2pi)
#   + (z+0.5)*log(z+7.5) - (z+7.5) + log s(z),  s(z) = c0 + sum_i c_i/(z+i).
_LANCZOS_C0 = 0.99999999999980993
_LANCZOS_COEFS = (
    676.5203681218851,
    -1259.1392167224028,
    771.32342877765313,
    -176.61502916214059,
    12.507343278686905,
    -0.13857109526572012,
    9.9843695780195716e-6,
    1.5056327351493116e-7,
)
_HALF_LOG_2PI = 0.9189385332046727  # 0.5 * log(2*pi)

_TARGET_BLOCK_BYTES = 2 * 1024 * 1024  # ~2 MiB/operand: HBM-efficiency plateau
_MIN_GRID_PROGRAMS = 4                 # v7x has 2 TCs; >=4 programs for balance


def _log_s_of_u(u):
    """log s(z) with z = 1/u - 1, written directly in u (float64, u in [0,1])."""
    u = np.asarray(u, dtype=np.float64)
    s = np.full_like(u, _LANCZOS_C0)
    for i, ci in enumerate(_LANCZOS_COEFS, start=1):
        # c_i / (z + i) = c_i * u / (1 + (i-1)*u)
        s = s + ci * u / (1.0 + (i - 1) * u)
    return np.log(s)


def _fit_log_s_poly(max_degree=16, target=2e-5):
    """Fit log s as a monomial polynomial in t = 2u-1 on u in [0,1].

    Fits a Chebyshev LSQ in float64, converts to monomial coefficients, and
    picks the smallest degree whose float32-emulated Horner error (the exact
    arithmetic the kernel will do) is below `target`.  Returns descending
    coefficients for Horner evaluation.
    """
    n_fit = 4096
    t_fit = np.cos(np.pi * (np.arange(n_fit) + 0.5) / n_fit)   # Cheb nodes in (-1,1)
    f_fit = _log_s_of_u(0.5 * (t_fit + 1.0))
    u_chk = np.linspace(0.0, 1.0, 4097)                        # incl. endpoints
    t_chk = (2.0 * u_chk - 1.0)
    f_chk = _log_s_of_u(u_chk)
    t_chk32 = t_chk.astype(np.float32)

    best = None
    for deg in range(6, max_degree + 1):
        cheb = np.polynomial.chebyshev.chebfit(t_fit, f_fit, deg)
        mono_asc = np.polynomial.chebyshev.cheb2poly(cheb)
        desc = mono_asc[::-1]
        # Emulate the kernel's float32 Horner.
        acc = np.full(t_chk32.shape, np.float32(desc[0]), dtype=np.float32)
        for c in desc[1:]:
            acc = acc * t_chk32 + np.float32(c)
        err = float(np.max(np.abs(acc.astype(np.float64) - f_chk)))
        if best is None or err < best[0]:
            best = (err, tuple(float(c) for c in desc))
        if err <= target:
            break
    return best[1]


_LOG_S_POLY = _fit_log_s_poly()


def _poly_log_s(t):
    """log s evaluated via the host-fitted polynomial; t = (1-z)/(1+z)."""
    acc = jnp.float32(_LOG_S_POLY[0])
    for c in _LOG_S_POLY[1:]:
        acc = acc * t + jnp.float32(c)
    return acc


def _zinb_kernel(y_pred_ref, theta_ref, pi_ref, y_true_ref, out_ref, *, lamda):
    f32 = jnp.float32
    eps = f32(EPS)
    one = f32(1.0)
    half = f32(0.5)
    g_half = f32(7.5)
    const = f32(_HALF_LOG_2PI - 7.5)   # fused -(z+7.5) Lanczos terms -> -7.5

    # Cast on load: allows bf16 inputs (bandwidth win on v5e) with f32 math.
    y_pred = y_pred_ref[...].astype(jnp.float32)
    theta = theta_ref[...].astype(jnp.float32)
    pi = pi_ref[...].astype(jnp.float32)
    y_true = y_true_ref[...].astype(jnp.float32)

    is_zero = y_true < f32(1e-8)
    theta_c = jnp.minimum(theta, f32(THETA_CLAMP_MAX))

    # Shared logs.  Each element keeps exactly one branch, so select the
    # clamped theta (NB branch) vs. raw theta (zero branch) BEFORE the log:
    # the zero branch then reuses these logs exactly, even for theta > 1e6.
    th_sel = jnp.where(is_zero, theta, theta_c)
    lt = jnp.log(th_sel + eps)                 # log(theta_c+eps) | ~log(theta)
    log_typ = jnp.log(th_sel + y_pred + eps)   # log(theta_c+y_pred+eps) | ...
    log_yp = jnp.log(y_pred + eps)

    # ---------------- zero_case_loss (unclamped theta, as in reference) -----
    # pow(theta/(theta+y_pred+eps), theta) == exp(theta*(log theta - log(theta+y_pred+eps)));
    # the eps inside lt shifts the exponent by <= ~1e-10 and makes theta=0 give
    # exp(0*finite) == 1, matching torch's pow(0, 0) == 1 with no special case.
    zero_nb = jnp.exp(theta * (lt - log_typ))
    zero_case = -jnp.log(pi + (one - pi) * zero_nb + eps)

    # ---------------- nb_case_loss (clamped theta, as in reference) ---------
    a = theta_c + eps
    ab = a + y_true
    # t1 = lgamma(a) + lgamma(y_true+1) - lgamma(ab) via the Lanczos identity
    #   lgamma(z+1) = 0.5*log(2pi) + (z+0.5)*log(z+7.5) - (z+7.5) + log s(z)
    # and lgamma(z) = lgamma(z+1) - log z;  log s(z) = P(t), t = (1-z)/(1+z).
    # Horner results are folded into t1 immediately to keep live ranges short.
    t1 = const - lt + jnp.log(ab)
    t1 = t1 + (a + half) * jnp.log(a + g_half) + _poly_log_s((one - a) / (one + a))
    t1 = t1 + (y_true + half) * jnp.log(y_true + g_half) + _poly_log_s(
        (one - y_true) / (one + y_true))
    t1 = t1 - ((ab + half) * jnp.log(ab + g_half) + _poly_log_s((one - ab) / (one + ab)))
    # t2: log(1 + y_pred/(theta_c+eps)) == log(theta_c + y_pred + eps) - lt.
    t2 = (theta_c + y_true) * (log_typ - lt) + y_true * (lt - log_yp)
    nb_case = t1 + t2

    loss = jnp.where(is_zero, zero_case, nb_case)
    out_ref[...] = loss + f32(lamda) * (pi * pi)


def _choose_block(M, N, row_align):
    """Lane-dense (multiple of 128) cols; rows sized to ~2 MiB f32 blocks;
    guarantee >= _MIN_GRID_PROGRAMS grid steps so v7x's 2nd TC gets work."""
    bc = min(N, 1024)
    while N % bc:
        bc -= 128
    target_rows = max(row_align,
                      ((_TARGET_BLOCK_BYTES // 4) // bc) // row_align * row_align)
    br = min(M, target_rows)
    while M % br:
        br -= row_align
    while (M // br) * (N // bc) < _MIN_GRID_PROGRAMS:
        if br % (2 * row_align) == 0:      # halving keeps alignment+divisibility
            br //= 2
        elif bc % 256 == 0:
            bc //= 2
        else:
            break
    return br, bc


def zinb_loss(y_pred, theta, pi, y_true, lamda, *, block_rows=None, block_cols=None):
    """ZINBLoss(reduction='none', eps=1e-10).forward(y_pred, theta, pi, y_true, lamda)."""
    assert y_pred.shape == theta.shape == pi.shape == y_true.shape
    M, N = y_pred.shape

    # bf16 inputs need (16,128) tiles; f32 needs (8,128).
    all_f32 = all(np.dtype(x.dtype).itemsize >= 4 for x in (y_pred, theta, pi, y_true))
    row_align = 8 if all_f32 else 16
    assert M % row_align == 0 and N % 128 == 0, "shape must tile to the dtype's (sublane,128)"

    br, bc = _choose_block(M, N, row_align)
    if block_rows is not None:
        br = block_rows
    if block_cols is not None:
        bc = block_cols
    assert M % br == 0 and N % bc == 0 and br % row_align == 0 and bc % 128 == 0

    spec = pl.BlockSpec((br, bc), lambda i, j: (i, j))
    kernel = functools.partial(_zinb_kernel, lamda=float(lamda))

    return pl.pallas_call(
        kernel,
        out_shape=jax.ShapeDtypeStruct((M, N), jnp.float32),
        grid=(M // br, N // bc),
        in_specs=[spec, spec, spec, spec],
        out_specs=spec,
        compiler_params=pltpu.CompilerParams(
            dimension_semantics=("parallel", "parallel"),
            vmem_limit_bytes=32 * 1024 * 1024,
        ),
    )(y_pred, theta, pi, y_true)


def zinb_loss_ref(y_pred, theta, pi, y_true, lamda, eps=EPS):
    """Pure-JAX reference matching the PyTorch module (reduction='none')."""
    from jax.scipy.special import gammaln

    theta_c = jnp.minimum(theta, THETA_CLAMP_MAX)
    t1 = gammaln(theta_c + eps) + gammaln(y_true + 1.0) - gammaln(y_true + theta_c + eps)
    t2 = (theta_c + y_true) * jnp.log(1.0 + y_pred / (theta_c + eps)) + y_true * (
        jnp.log(theta_c + eps) - jnp.log(y_pred + eps)
    )
    nb_case = t1 + t2
    zero_nb = jnp.power(theta / (theta + y_pred + eps), theta)
    zero_case = -jnp.log(pi + (1.0 - pi) * zero_nb + eps)
    t_sel = jnp.where(y_true < 1e-8, zero_case, nb_case)
    return t_sel + lamda * jnp.square(pi)


if __name__ == "__main__":
    key = jax.random.PRNGKey(0)
    k1, k2, k3, k4 = jax.random.split(key, 4)

    M, N = 128, 256  # e.g. (cells, genes) count-matrix tile
    # counts in [0, 5], includes exact zeros (exercises the zero-inflated branch)
    y_true = jnp.floor(jax.random.uniform(k1, (M, N), dtype=jnp.float32) * 6.0)
    y_pred = jax.random.uniform(k2, (M, N), dtype=jnp.float32, minval=0.1, maxval=10.0)
    theta = jax.random.uniform(k3, (M, N), dtype=jnp.float32, minval=0.5, maxval=5.0)
    pi = jax.random.uniform(k4, (M, N), dtype=jnp.float32, minval=0.01, maxval=0.99)
    lamda = 0.5

    out = zinb_loss(y_pred, theta, pi, y_true, lamda)
    jax.block_until_ready(out)

    ref = zinb_loss_ref(y_pred, theta, pi, y_true, lamda)
    np.testing.assert_allclose(np.asarray(out), np.asarray(ref), rtol=2e-3, atol=2e-3)

    print("KERNEL_OK")
</pallas_src>

<mosaic_0001>
module attributes {stable_mosaic.version = 11 : i64} {
  func.func @_zinb_kernel(%arg0: i32, %arg1: i32, %arg2: memref<32x256xf32, #tpu.memory_space<vmem>>, %arg3: memref<32x256xf32, #tpu.memory_space<vmem>>, %arg4: memref<32x256xf32, #tpu.memory_space<vmem>>, %arg5: memref<32x256xf32, #tpu.memory_space<vmem>>, %arg6: memref<32x256xf32, #tpu.memory_space<vmem>>) attributes {dimension_semantics = [#tpu.dimension_semantics<parallel>, #tpu.dimension_semantics<parallel>], iteration_bounds = array<i64: 4, 1>, scalar_prefetch = 0 : i64, scratch_operands = 0 : i64, tpu.core_type = #tpu.core_type<tc>, window_params = [{transform_indices = @transform_0, window_bounds = array<i64: 32, 256>}, {transform_indices = @transform_1, window_bounds = array<i64: 32, 256>}, {transform_indices = @transform_2, window_bounds = array<i64: 32, 256>}, {transform_indices = @transform_3, window_bounds = array<i64: 32, 256>}, {transform_indices = @transform_4, window_bounds = array<i64: 32, 256>}]} {
    %c0 = arith.constant 0 : index
    %c0_0 = arith.constant 0 : index
    %0 = vector.load %arg2[%c0, %c0_0] : memref<32x256xf32, #tpu.memory_space<vmem>>, vector<32x256xf32>
    %c0_1 = arith.constant 0 : index
    %c0_2 = arith.constant 0 : index
    %1 = vector.load %arg3[%c0_1, %c0_2] : memref<32x256xf32, #tpu.memory_space<vmem>>, vector<32x256xf32>
    %c0_3 = arith.constant 0 : index
    %c0_4 = arith.constant 0 : index
    %2 = vector.load %arg4[%c0_3, %c0_4] : memref<32x256xf32, #tpu.memory_space<vmem>>, vector<32x256xf32>
    %c0_5 = arith.constant 0 : index
    %c0_6 = arith.constant 0 : index
    %3 = vector.load %arg5[%c0_5, %c0_6] : memref<32x256xf32, #tpu.memory_space<vmem>>, vector<32x256xf32>
    %cst = arith.constant 9.99999993E-9 : f32
    %4 = vector.broadcast %cst : f32 to vector<32x256xf32>
    %5 = arith.cmpf olt, %3, %4 : vector<32x256xf32>
    %cst_7 = arith.constant 1.000000e+06 : f32
    %6 = vector.broadcast %cst_7 : f32 to vector<32x256xf32>
    %7 = arith.minimumf %1, %6 : vector<32x256xf32>
    %8 = arith.select %5, %1, %7 : vector<32x256xi1>, vector<32x256xf32>
    %cst_8 = arith.constant 1.000000e-10 : f32
    %9 = vector.broadcast %cst_8 : f32 to vector<32x256xf32>
    %10 = arith.addf %8, %9 : vector<32x256xf32>
    %11 = math.log %10 : vector<32x256xf32>
    %12 = arith.addf %8, %0 : vector<32x256xf32>
    %cst_9 = arith.constant 1.000000e-10 : f32
    %13 = vector.broadcast %cst_9 : f32 to vector<32x256xf32>
    %14 = arith.addf %12, %13 : vector<32x256xf32>
    %15 = math.log %14 : vector<32x256xf32>
    %cst_10 = arith.constant 1.000000e-10 : f32
    %16 = vector.broadcast %cst_10 : f32 to vector<32x256xf32>
    %17 = arith.addf %0, %16 : vector<32x256xf32>
    %18 = math.log %17 : vector<32x256xf32>
    %19 = arith.subf %11, %15 : vector<32x256xf32>
    %20 = arith.mulf %1, %19 : vector<32x256xf32>
    %21 = math.exp %20 : vector<32x256xf32>
    %cst_11 = arith.constant 1.000000e+00 : f32
    %22 = vector.broadcast %cst_11 : f32 to vector<32x256xf32>
    %23 = arith.subf %22, %2 : vector<32x256xf32>
    %24 = arith.mulf %23, %21 : vector<32x256xf32>
    %25 = arith.addf %2, %24 : vector<32x256xf32>
    %cst_12 = arith.constant 1.000000e-10 : f32
    %26 = vector.broadcast %cst_12 : f32 to vector<32x256xf32>
    %27 = arith.addf %25, %26 : vector<32x256xf32>
    %28 = math.log %27 : vector<32x256xf32>
    %cst_13 = arith.constant 0.000000e+00 : f32
    %29 = vector.broadcast %cst_13 : f32 to vector<32x256xf32>
    %30 = arith.subf %29, %28 : vector<32x256xf32>
    %cst_14 = arith.constant 1.000000e-10 : f32
    %31 = vector.broadcast %cst_14 : f32 to vector<32x256xf32>
    %32 = arith.addf %7, %31 : vector<32x256xf32>
    %33 = arith.addf %32, %3 : vector<32x256xf32>
    %cst_15 = arith.constant -6.58106136 : f32
    %34 = vector.broadcast %cst_15 : f32 to vector<32x256xf32>
    %35 = arith.subf %34, %11 : vector<32x256xf32>
    %36 = math.log %33 : vector<32x256xf32>
    %37 = arith.addf %35, %36 : vector<32x256xf32>
    %cst_16 = arith.constant 5.000000e-01 : f32
    %38 = vector.broadcast %cst_16 : f32 to vector<32x256xf32>
    %39 = arith.addf %32, %38 : vector<32x256xf32>
    %cst_17 = arith.constant 7.500000e+00 : f32
    %40 = vector.broadcast %cst_17 : f32 to vector<32x256xf32>
    %41 = arith.addf %32, %40 : vector<32x256xf32>
    %42 = math.log %41 : vector<32x256xf32>
    %43 = arith.mulf %39, %42 : vector<32x256xf32>
    %44 = arith.addf %37, %43 : vector<32x256xf32>
    %cst_18 = arith.constant 1.000000e+00 : f32
    %45 = vector.broadcast %cst_18 : f32 to vector<32x256xf32>
    %46 = arith.subf %45, %32 : vector<32x256xf32>
    %cst_19 = arith.constant 1.000000e+00 : f32
    %47 = vector.broadcast %cst_19 : f32 to vector<32x256xf32>
    %48 = arith.addf %47, %32 : vector<32x256xf32>
    %49 = arith.divf %46, %48 : vector<32x256xf32>
    %cst_20 = arith.constant -0.155167356 : f32
    %50 = vector.broadcast %cst_20 : f32 to vector<32x256xf32>
    %51 = arith.mulf %50, %49 : vector<32x256xf32>
    %cst_21 = arith.constant 0.177826166 : f32
    %52 = vector.broadcast %cst_21 : f32 to vector<32x256xf32>
    %53 = arith.addf %51, %52 : vector<32x256xf32>
    %54 = arith.mulf %53, %49 : vector<32x256xf32>
    %cst_22 = arith.constant 0.338382602 : f32
    %55 = vector.broadcast %cst_22 : f32 to vector<32x256xf32>
    %56 = arith.addf %54, %55 : vector<32x256xf32>
    %57 = arith.mulf %56, %49 : vector<32x256xf32>
    %cst_23 = arith.constant -0.341079563 : f32
    %58 = vector.broadcast %cst_23 : f32 to vector<32x256xf32>
    %59 = arith.addf %57, %58 : vector<32x256xf32>
    %60 = arith.mulf %59, %49 : vector<32x256xf32>
    %cst_24 = arith.constant -0.408338457 : f32
    %61 = vector.broadcast %cst_24 : f32 to vector<32x256xf32>
    %62 = arith.addf %60, %61 : vector<32x256xf32>
    %63 = arith.mulf %62, %49 : vector<32x256xf32>
    %cst_25 = arith.constant 0.394275874 : f32
    %64 = vector.broadcast %cst_25 : f32 to vector<32x256xf32>
    %65 = arith.addf %63, %64 : vector<32x256xf32>
    %66 = arith.mulf %65, %49 : vector<32x256xf32>
    %cst_26 = arith.constant 0.125387982 : f32
    %67 = vector.broadcast %cst_26 : f32 to vector<32x256xf32>
    %68 = arith.addf %66, %67 : vector<32x256xf32>
    %69 = arith.mulf %68, %49 : vector<32x256xf32>
    %cst_27 = arith.constant -0.0527401641 : f32
    %70 = vector.broadcast %cst_27 : f32 to vector<32x256xf32>
    %71 = arith.addf %69, %70 : vector<32x256xf32>
    %72 = arith.mulf %71, %49 : vector<32x256xf32>
    %cst_28 = arith.constant -0.211544171 : f32
    %73 = vector.broadcast %cst_28 : f32 to vector<32x256xf32>
    %74 = arith.addf %72, %73 : vector<32x256xf32>
    %75 = arith.mulf %74, %49 : vector<32x256xf32>
    %cst_29 = arith.constant 0.268654287 : f32
    %76 = vector.broadcast %cst_29 : f32 to vector<32x256xf32>
    %77 = arith.addf %75, %76 : vector<32x256xf32>
    %78 = arith.mulf %77, %49 : vector<32x256xf32>
    %cst_30 = arith.constant -0.345799774 : f32
    %79 = vector.broadcast %cst_30 : f32 to vector<32x256xf32>
    %80 = arith.addf %78, %79 : vector<32x256xf32>
    %81 = arith.mulf %80, %49 : vector<32x256xf32>
    %cst_31 = arith.constant 0.55225122 : f32
    %82 = vector.broadcast %cst_31 : f32 to vector<32x256xf32>
    %83 = arith.addf %81, %82 : vector<32x256xf32>
    %84 = arith.mulf %83, %49 : vector<32x256xf32>
    %cst_32 = arith.constant -0.927076578 : f32
    %85 = vector.broadcast %cst_32 : f32 to vector<32x256xf32>
    %86 = arith.addf %84, %85 : vector<32x256xf32>
    %87 = arith.mulf %86, %49 : vector<32x256xf32>
    %cst_33 = arith.constant 1.78760684 : f32
    %88 = vector.broadcast %cst_33 : f32 to vector<32x256xf32>
    %89 = arith.addf %87, %88 : vector<32x256xf32>
    %90 = arith.mulf %89, %49 : vector<32x256xf32>
    %cst_34 = arith.constant 4.37096548 : f32
    %91 = vector.broadcast %cst_34 : f32 to vector<32x256xf32>
    %92 = arith.addf %90, %91 : vector<32x256xf32>
    %93 = arith.addf %44, %92 : vector<32x256xf32>
    %cst_35 = arith.constant 5.000000e-01 : f32
    %94 = vector.broadcast %cst_35 : f32 to vector<32x256xf32>
    %95 = arith.addf %3, %94 : vector<32x256xf32>
    %cst_36 = arith.constant 7.500000e+00 : f32
    %96 = vector.broadcast %cst_36 : f32 to vector<32x256xf32>
    %97 = arith.addf %3, %96 : vector<32x256xf32>
    %98 = math.log %97 : vector<32x256xf32>
    %99 = arith.mulf %95, %98 : vector<32x256xf32>
    %100 = arith.addf %93, %99 : vector<32x256xf32>
    %cst_37 = arith.constant 1.000000e+00 : f32
    %101 = vector.broadcast %cst_37 : f32 to vector<32x256xf32>
    %102 = arith.subf %101, %3 : vector<32x256xf32>
    %cst_38 = arith.constant 1.000000e+00 : f32
    %103 = vector.broadcast %cst_38 : f32 to vector<32x256xf32>
    %104 = arith.addf %103, %3 : vector<32x256xf32>
    %105 = arith.divf %102, %104 : vector<32x256xf32>
    %cst_39 = arith.constant -0.155167356 : f32
    %106 = vector.broadcast %cst_39 : f32 to vector<32x256xf32>
    %107 = arith.mulf %106, %105 : vector<32x256xf32>
    %cst_40 = arith.constant 0.177826166 : f32
    %108 = vector.broadcast %cst_40 : f32 to vector<32x256xf32>
    %109 = arith.addf %107, %108 : vector<32x256xf32>
    %110 = arith.mulf %109, %105 : vector<32x256xf32>
    %cst_41 = arith.constant 0.338382602 : f32
    %111 = vector.broadcast %cst_41 : f32 to vector<32x256xf32>
    %112 = arith.addf %110, %111 : vector<32x256xf32>
    %113 = arith.mulf %112, %105 : vector<32x256xf32>
    %cst_42 = arith.constant -0.341079563 : f32
    %114 = vector.broadcast %cst_42 : f32 to vector<32x256xf32>
    %115 = arith.addf %113, %114 : vector<32x256xf32>
    %116 = arith.mulf %115, %105 : vector<32x256xf32>
    %cst_43 = arith.constant -0.408338457 : f32
    %117 = vector.broadcast %cst_43 : f32 to vector<32x256xf32>
    %118 = arith.addf %116, %117 : vector<32x256xf32>
    %119 = arith.mulf %118, %105 : vector<32x256xf32>
    %cst_44 = arith.constant 0.394275874 : f32
    %120 = vector.broadcast %cst_44 : f32 to vector<32x256xf32>
    %121 = arith.addf %119, %120 : vector<32x256xf32>
    %122 = arith.mulf %121, %105 : vector<32x256xf32>
    %cst_45 = arith.constant 0.125387982 : f32
    %123 = vector.broadcast %cst_45 : f32 to vector<32x256xf32>
    %124 = arith.addf %122, %123 : vector<32x256xf32>
    %125 = arith.mulf %124, %105 : vector<32x256xf32>
    %cst_46 = arith.constant -0.0527401641 : f32
    %126 = vector.broadcast %cst_46 : f32 to vector<32x256xf32>
    %127 = arith.addf %125, %126 : vector<32x256xf32>
    %128 = arith.mulf %127, %105 : vector<32x256xf32>
    %cst_47 = arith.constant -0.211544171 : f32
    %129 = vector.broadcast %cst_47 : f32 to vector<32x256xf32>
    %130 = arith.addf %128, %129 : vector<32x256xf32>
    %131 = arith.mulf %130, %105 : vector<32x256xf32>
    %cst_48 = arith.constant 0.268654287 : f32
    %132 = vector.broadcast %cst_48 : f32 to vector<32x256xf32>
    %133 = arith.addf %131, %132 : vector<32x256xf32>
    %134 = arith.mulf %133, %105 : vector<32x256xf32>
    %cst_49 = arith.constant -0.345799774 : f32
    %135 = vector.broadcast %cst_49 : f32 to vector<32x256xf32>
    %136 = arith.addf %134, %135 : vector<32x256xf32>
    %137 = arith.mulf %136, %105 : vector<32x256xf32>
    %cst_50 = arith.constant 0.55225122 : f32
    %138 = vector.broadcast %cst_50 : f32 to vector<32x256xf32>
    %139 = arith.addf %137, %138 : vector<32x256xf32>
    %140 = arith.mulf %139, %105 : vector<32x256xf32>
    %cst_51 = arith.constant -0.927076578 : f32
    %141 = vector.broadcast %cst_51 : f32 to vector<32x256xf32>
    %142 = arith.addf %140, %141 : vector<32x256xf32>
    %143 = arith.mulf %142, %105 : vector<32x256xf32>
    %cst_52 = arith.constant 1.78760684 : f32
    %144 = vector.broadcast %cst_52 : f32 to vector<32x256xf32>
    %145 = arith.addf %143, %144 : vector<32x256xf32>
    %146 = arith.mulf %145, %105 : vector<32x256xf32>
    %cst_53 = arith.constant 4.37096548 : f32
    %147 = vector.broadcast %cst_53 : f32 to vector<32x256xf32>
    %148 = arith.addf %146, %147 : vector<32x256xf32>
    %149 = arith.addf %100, %148 : vector<32x256xf32>
    %cst_54 = arith.constant 5.000000e-01 : f32
    %150 = vector.broadcast %cst_54 : f32 to vector<32x256xf32>
    %151 = arith.addf %33, %150 : vector<32x256xf32>
    %cst_55 = arith.constant 7.500000e+00 : f32
    %152 = vector.broadcast %cst_55 : f32 to vector<32x256xf32>
    %153 = arith.addf %33, %152 : vector<32x256xf32>
    %154 = math.log %153 : vector<32x256xf32>
    %155 = arith.mulf %151, %154 : vector<32x256xf32>
    %cst_56 = arith.constant 1.000000e+00 : f32
    %156 = vector.broadcast %cst_56 : f32 to vector<32x256xf32>
    %157 = arith.subf %156, %33 : vector<32x256xf32>
    %cst_57 = arith.constant 1.000000e+00 : f32
    %158 = vector.broadcast %cst_57 : f32 to vector<32x256xf32>
    %159 = arith.addf %158, %33 : vector<32x256xf32>
    %160 = arith.divf %157, %159 : vector<32x256xf32>
    %cst_58 = arith.constant -0.155167356 : f32
    %161 = vector.broadcast %cst_58 : f32 to vector<32x256xf32>
    %162 = arith.mulf %161, %160 : vector<32x256xf32>
    %cst_59 = arith.constant 0.177826166 : f32
    %163 = vector.broadcast %cst_59 : f32 to vector<32x256xf32>
    %164 = arith.addf %162, %163 : vector<32x256xf32>
    %165 = arith.mulf %164, %160 : vector<32x256xf32>
    %cst_60 = arith.constant 0.338382602 : f32
    %166 = vector.broadcast %cst_60 : f32 to vector<32x256xf32>
    %167 = arith.addf %165, %166 : vector<32x256xf32>
    %168 = arith.mulf %167, %160 : vector<32x256xf32>
    %cst_61 = arith.constant -0.341079563 : f32
    %169 = vector.broadcast %cst_61 : f32 to vector<32x256xf32>
    %170 = arith.addf %168, %169 : vector<32x256xf32>
    %171 = arith.mulf %170, %160 : vector<32x256xf32>
    %cst_62 = arith.constant -0.408338457 : f32
    %172 = vector.broadcast %cst_62 : f32 to vector<32x256xf32>
    %173 = arith.addf %171, %172 : vector<32x256xf32>
    %174 = arith.mulf %173, %160 : vector<32x256xf32>
    %cst_63 = arith.constant 0.394275874 : f32
    %175 = vector.broadcast %cst_63 : f32 to vector<32x256xf32>
    %176 = arith.addf %174, %175 : vector<32x256xf32>
    %177 = arith.mulf %176, %160 : vector<32x256xf32>
    %cst_64 = arith.constant 0.125387982 : f32
    %178 = vector.broadcast %cst_64 : f32 to vector<32x256xf32>
    %179 = arith.addf %177, %178 : vector<32x256xf32>
    %180 = arith.mulf %179, %160 : vector<32x256xf32>
    %cst_65 = arith.constant -0.0527401641 : f32
    %181 = vector.broadcast %cst_65 : f32 to vector<32x256xf32>
    %182 = arith.addf %180, %181 : vector<32x256xf32>
    %183 = arith.mulf %182, %160 : vector<32x256xf32>
    %cst_66 = arith.constant -0.211544171 : f32
    %184 = vector.broadcast %cst_66 : f32 to vector<32x256xf32>
    %185 = arith.addf %183, %184 : vector<32x256xf32>
    %186 = arith.mulf %185, %160 : vector<32x256xf32>
    %cst_67 = arith.constant 0.268654287 : f32
    %187 = vector.broadcast %cst_67 : f32 to vector<32x256xf32>
    %188 = arith.addf %186, %187 : vector<32x256xf32>
    %189 = arith.mulf %188, %160 : vector<32x256xf32>
    %cst_68 = arith.constant -0.345799774 : f32
    %190 = vector.broadcast %cst_68 : f32 to vector<32x256xf32>
    %191 = arith.addf %189, %190 : vector<32x256xf32>
    %192 = arith.mulf %191, %160 : vector<32x256xf32>
    %cst_69 = arith.constant 0.55225122 : f32
    %193 = vector.broadcast %cst_69 : f32 to vector<32x256xf32>
    %194 = arith.addf %192, %193 : vector<32x256xf32>
    %195 = arith.mulf %194, %160 : vector<32x256xf32>
    %cst_70 = arith.constant -0.927076578 : f32
    %196 = vector.broadcast %cst_70 : f32 to vector<32x256xf32>
    %197 = arith.addf %195, %196 : vector<32x256xf32>
    %198 = arith.mulf %197, %160 : vector<32x256xf32>
    %cst_71 = arith.constant 1.78760684 : f32
    %199 = vector.broadcast %cst_71 : f32 to vector<32x256xf32>
    %200 = arith.addf %198, %199 : vector<32x256xf32>
    %201 = arith.mulf %200, %160 : vector<32x256xf32>
    %cst_72 = arith.constant 4.37096548 : f32
    %202 = vector.broadcast %cst_72 : f32 to vector<32x256xf32>
    %203 = arith.addf %201, %202 : vector<32x256xf32>
    %204 = arith.addf %155, %203 : vector<32x256xf32>
    %205 = arith.subf %149, %204 : vector<32x256xf32>
    %206 = arith.addf %7, %3 : vector<32x256xf32>
    %207 = arith.subf %15, %11 : vector<32x256xf32>
    %208 = arith.mulf %206, %207 : vector<32x256xf32>
    %209 = arith.subf %11, %18 : vector<32x256xf32>
    %210 = arith.mulf %3, %209 : vector<32x256xf32>
    %211 = arith.addf %208, %210 : vector<32x256xf32>
    %212 = arith.addf %205, %211 : vector<32x256xf32>
    %213 = arith.select %5, %30, %212 : vector<32x256xi1>, vector<32x256xf32>
    %214 = arith.mulf %2, %2 : vector<32x256xf32>
    %cst_73 = arith.constant 5.000000e-01 : f32
    %215 = vector.broadcast %cst_73 : f32 to vector<32x256xf32>
    %216 = arith.mulf %215, %214 : vector<32x256xf32>
    %217 = arith.addf %213, %216 : vector<32x256xf32>
    %c0_74 = arith.constant 0 : index
    %c0_75 = arith.constant 0 : index
    %218 = vector.load %arg6[%c0_74, %c0_75] : memref<32x256xf32, #tpu.memory_space<vmem>>, vector<32x256xf32>
    tpu.vector_store %arg6[%c0_74, %c0_75], %217 {strides = array<i32>} : memref<32x256xf32, #tpu.memory_space<vmem>>, vector<32x256xf32>,
    return
  }
  func.func @transform_0(%arg0: i32, %arg1: i32) -> (i32, i32) {
    %c0_i32 = arith.constant 0 : i32
    return %arg0, %arg1 : i32, i32
  }
  func.func @transform_1(%arg0: i32, %arg1: i32) -> (i32, i32) {
    %c0_i32 = arith.constant 0 : i32
    return %arg0, %arg1 : i32, i32
  }
  func.func @transform_2(%arg0: i32, %arg1: i32) -> (i32, i32) {
    %c0_i32 = arith.constant 0 : i32
    return %arg0, %arg1 : i32, i32
  }
  func.func @transform_3(%arg0: i32, %arg1: i32) -> (i32, i32) {
    %c0_i32 = arith.constant 0 : i32
    return %arg0, %arg1 : i32, i32
  }
  func.func @transform_4(%arg0: i32, %arg1: i32) -> (i32, i32) {
    %c0_i32 = arith.constant 0 : i32
    return %arg0, %arg1 : i32, i32
  }
}

</mosaic_0001>

<llo_original>
// kernel: tpu_custom_call.1
$region0: #{tpu_custom_call.1}
  #allocation0 [shape = 'u32[]', space=smem, size = 0x4, offset = 0x4, fixed_abs, tag = 'smem constant byte address 0x4 - core index']
  #allocation1 [shape = 'u32[144,128]{1,0:T(1,128)}', space=vmem, size = 0x12000, scoped, tag = 'internal scratch']
  %s0 = inlined_call_operand.hbm [shape: f32[128,256], index: 0, kind: input, shape index: {}]
  %s1 = inlined_call_operand.hbm [shape: f32[128,256], index: 1, kind: input, shape index: {}]
  %s2 = inlined_call_operand.hbm [shape: f32[128,256], index: 2, kind: input, shape index: {}]
  %s3 = inlined_call_operand.hbm [shape: f32[128,256], index: 3, kind: input, shape index: {}]
  %s4 = inlined_call_operand.hbm [shape: f32[128,256], index: 4, kind: output, shape index: {}]
  %s5 = sld [smem:[#allocation0]]
  $region65: #{tpu_custom_call.1} parent=0
    _
  %s7 = ssub.s32 1, %s5
  %s8 = scalar_select 0, %s7, %s5
  $region1: #{tpu_custom_call.1} parent=0
    #allocation2 [shape = 'u8[65536]{0}', space=vmem, size = 0x10000, scoped, tag = 'input window, operand 0']
    #allocation3 [shape = 's32[2]{0}', space=sflag, size = 0x8, scoped, tag = 'scoped memory for tpu_custom_call.1']
    #allocation4 [shape = 's32[2]{0}', space=sflag, size = 0x8, scoped, tag = 'scoped memory for tpu_custom_call.1']
    #allocation5 [shape = 'u8[65536]{0}', space=vmem, size = 0x10000, scoped, tag = 'input window, operand 1']
    #allocation6 [shape = 's32[2]{0}', space=sflag, size = 0x8, scoped, tag = 'scoped memory for tpu_custom_call.1']
    #allocation7 [shape = 'u8[65536]{0}', space=vmem, size = 0x10000, scoped, tag = 'input window, operand 2']
    #allocation8 [shape = 'u8[65536]{0}', space=vmem, size = 0x10000, scoped, tag = 'input window, operand 3']
    #allocation9 [shape = 's32[2]{0}', space=sflag, size = 0x8, scoped, tag = 'scoped memory for tpu_custom_call.1']
    #allocation10 [shape = 'u8[65536]{0}', space=vmem, size = 0x10000, scoped, tag = 'output window, operand 0']
    %9 = vsyncpa [#allocation3], 0
    %s10 = scalar_lea.sflag [#allocation3], 1
    %11 = vsyncpa %s10, 0
    %12 = vsyncpa [#allocation6], 0
    %s13 = scalar_lea.sflag [#allocation6], 1
    %14 = vsyncpa %s13, 0
    %15 = vsyncpa [#allocation9], 0
    %s16 = scalar_lea.sflag [#allocation9], 1
    %17 = vsyncpa %s16, 0
    %18 = vsyncpa [#allocation4], 0
    %s19 = scalar_lea.sflag [#allocation4], 1
    %20 = vsyncpa %s19, 0
    loop: start=0, step=1, limit=6
    $region2: #{tpu_custom_call.1} parent=1 // loop_pre_header
      _
    $region3: #{tpu_custom_call.1} parent=1 // loop_header
      %s22 = sphi 0, %s26
      %p23 = scmp.ge.s32.totalorder %s22, 6
      %s29 = sphi 0, %s41
      %s30 = sphi 0, %s37
      %s31 = sphi 0, %s29
      %s32 = sphi 0, %s30
      %s33 = sphi 0, %s31
      %s34 = sphi 0, %s32
      %s46 = sphi 0, %s48
      %s49 = sphi 0, %s46
      %s50 = sphi 0, %s49
      %s66 = sphi 0, %s50
      %s74 = sphi 0, %s76
      %s77 = sphi 0, %s74
      %s78 = sphi 0, %s77
      %s94 = sphi 0, %s78
      %s102 = sphi 0, %s104
      %s105 = sphi 0, %s102
      %s106 = sphi 0, %s105
      %s122 = sphi 0, %s106
      %s130 = sphi 0, %s132
      %s133 = sphi 0, %s130
      %s134 = sphi 0, %s133
      %s150 = sphi 0, %s134
      %s158 = sphi 0, %s160
      %s161 = sphi 0, %s158
      %s162 = sphi 0, %s161
      %s178 = sphi 0, %s162
    $region4: #{tpu_custom_call.1} parent=1 // loop_header_branch
      %25 = sbr.rel (%p23) target = $region8
    $region5: #{tpu_custom_call.1} parent=1 // loop_body
      %s27 = ssub.s32 %s22, 1
      %s28 = ssub.s32 %s22, 2
      %s35 = sadd.s32 1, %s30
      %p36 = scmp.ge.s32.totalorder %s35, 1
      %s37 = scalar_select %p36, 0, %s35
      %s38 = sadd.s32 1, %s29
      %s39 = scalar_select %p36, %s38, %s29
      %p40 = scmp.ge.s32.totalorder %s39, 4
      %s41 = scalar_select %p40, 0, %s39
      %s42 = ssub.s32 %s29, %s41
      %s43 = ssub.s32 %s30, %s37
      %s44 = sor.u32 %s42, %s43
      %p45 = scmp.eq.s32.totalorder %s44, 0
      %s47 = sadd.s32 %s46, 1
      %s48 = scalar_select %p45, %s46, %s47
      %p51 = pneg %p45
      %p52 = scmp.eq.s32.totalorder %s22, 3
      %p53 = por %p51, %p52
      %p54 = scmp.ne.s32.totalorder %s46, %s49
      %p55 = scmp.eq.s32.totalorder %s22, 0
      %p56 = por %p54, %p55
      %p57 = scmp.ne.s32.totalorder %s46, %s49
      %p58 = scmp.eq.s32.totalorder %s27, 3
      %p59 = por %p57, %p58
      %p60 = scmp.ne.s32.totalorder %s49, %s50
      %p61 = scmp.eq.s32.totalorder %s27, 0
      %p62 = por %p60, %p61
      %p63 = scmp.ne.s32.totalorder %s49, %s50
      %p64 = scmp.eq.s32.totalorder %s28, 3
      %p65 = por %p63, %p64
      %p67 = scmp.ne.s32.totalorder %s50, %s66
      %p68 = scmp.eq.s32.totalorder %s28, 0
      %p69 = por %p67, %p68
      %s70 = ssub.s32 %s29, %s41
      %s71 = ssub.s32 %s30, %s37
      %s72 = sor.u32 %s70, %s71
      %p73 = scmp.eq.s32.totalorder %s72, 0
      %s75 = sadd.s32 %s74, 1
      %s76 = scalar_select %p73, %s74, %s75
      %p79 = pneg %p73
      %p80 = scmp.eq.s32.totalorder %s22, 3
      %p81 = por %p79, %p80
      %p82 = scmp.ne.s32.totalorder %s74, %s77
      %p83 = scmp.eq.s32.totalorder %s22, 0
      %p84 = por %p82, %p83
      %p85 = scmp.ne.s32.totalorder %s74, %s77
      %p86 = scmp.eq.s32.totalorder %s27, 3
      %p87 = por %p85, %p86
      %p88 = scmp.ne.s32.totalorder %s77, %s78
      %p89 = scmp.eq.s32.totalorder %s27, 0
      %p90 = por %p88, %p89
      %p91 = scmp.ne.s32.totalorder %s77, %s78
      %p92 = scmp.eq.s32.totalorder %s28, 3
      %p93 = por %p91, %p92
      %p95 = scmp.ne.s32.totalorder %s78, %s94
      %p96 = scmp.eq.s32.totalorder %s28, 0
      %p97 = por %p95, %p96
      %s98 = ssub.s32 %s29, %s41
      %s99 = ssub.s32 %s30, %s37
      %s100 = sor.u32 %s98, %s99
      %p101 = scmp.eq.s32.totalorder %s100, 0
      %s103 = sadd.s32 %s102, 1
      %s104 = scalar_select %p101, %s102, %s103
      %p107 = pneg %p101
      %p108 = scmp.eq.s32.totalorder %s22, 3
      %p109 = por %p107, %p108
      %p110 = scmp.ne.s32.totalorder %s102, %s105
      %p111 = scmp.eq.s32.totalorder %s22, 0
      %p112 = por %p110, %p111
      %p113 = scmp.ne.s32.totalorder %s102, %s105
      %p114 = scmp.eq.s32.totalorder %s27, 3
      %p115 = por %p113, %p114
      %p116 = scmp.ne.s32.totalorder %s105, %s106
      %p117 = scmp.eq.s32.totalorder %s27, 0
      %p118 = por %p116, %p117
      %p119 = scmp.ne.s32.totalorder %s105, %s106
      %p120 = scmp.eq.s32.totalorder %s28, 3
      %p121 = por %p119, %p120
      %p123 = scmp.ne.s32.totalorder %s106, %s122
      %p124 = scmp.eq.s32.totalorder %s28, 0
      %p125 = por %p123, %p124
      %s126 = ssub.s32 %s29, %s41
      %s127 = ssub.s32 %s30, %s37
      %s128 = sor.u32 %s126, %s127
      %p129 = scmp.eq.s32.totalorder %s128, 0
      %s131 = sadd.s32 %s130, 1
      %s132 = scalar_select %p129, %s130, %s131
      %p135 = pneg %p129
      %p136 = scmp.eq.s32.totalorder %s22, 3
      %p137 = por %p135, %p136
      %p138 = scmp.ne.s32.totalorder %s130, %s133
      %p139 = scmp.eq.s32.totalorder %s22, 0
      %p140 = por %p138, %p139
      %p141 = scmp.ne.s32.totalorder %s130, %s133
      %p142 = scmp.eq.s32.totalorder %s27, 3
      %p143 = por %p141, %p142
      %p144 = scmp.ne.s32.totalorder %s133, %s134
      %p145 = scmp.eq.s32.totalorder %s27, 0
      %p146 = por %p144, %p145
      %p147 = scmp.ne.s32.totalorder %s133, %s134
      %p148 = scmp.eq.s32.totalorder %s28, 3
      %p149 = por %p147, %p148
      %p151 = scmp.ne.s32.totalorder %s134, %s150
      %p152 = scmp.eq.s32.totalorder %s28, 0
      %p153 = por %p151, %p152
      %s154 = ssub.s32 %s29, %s41
      %s155 = ssub.s32 %s30, %s37
      %s156 = sor.u32 %s154, %s155
      %p157 = scmp.eq.s32.totalorder %s156, 0
      %s159 = sadd.s32 %s158, 1
      %s160 = scalar_select %p157, %s158, %s159
      %p163 = pneg %p157
      %p164 = scmp.eq.s32.totalorder %s22, 3
      %p165 = por %p163, %p164
      %p166 = scmp.ne.s32.totalorder %s158, %s161
      %p167 = scmp.eq.s32.totalorder %s22, 0
      %p168 = por %p166, %p167
      %p169 = scmp.ne.s32.totalorder %s158, %s161
      %p170 = scmp.eq.s32.totalorder %s27, 3
      %p171 = por %p169, %p170
      %p172 = scmp.ne.s32.totalorder %s161, %s162
      %p173 = scmp.eq.s32.totalorder %s27, 0
      %p174 = por %p172, %p173
      %p175 = scmp.ne.s32.totalorder %s161, %s162
      %p176 = scmp.eq.s32.totalorder %s28, 3
      %p177 = por %p175, %p176
      %p179 = scmp.ne.s32.totalorder %s162, %s178
      %p180 = scmp.eq.s32.totalorder %s28, 0
      %p181 = por %p179, %p180
      %p182 = scmp.le.s32.totalorder 1, %s22
      %p183 = scmp.lt.s32.totalorder %s22, 5
      %p184 = pnand %p182, %p183
      %p185 = pneg %p184
      // Predicated region
      $region9: #{tpu_custom_call.1} parent=5 // pred_check
        _
      $region10: #{tpu_custom_call.1} parent=5 // pred_check_branch
        %187 = sbr.rel (%p184) target = $region12
      $region11: #{tpu_custom_call.1} parent=5 // pred_region
        %s188 = ssub.s32 %s22, 1
      $region12: #{tpu_custom_call.1} parent=5 // pred_fallthru
        _
      %p189 = scmp.lt.s32.totalorder %s22, 4
      // Predicated region
      $region13: #{tpu_custom_call.1} parent=5 // pred_check
        %p190 = pneg %p189
      $region14: #{tpu_custom_call.1} parent=5 // pred_check_branch
        %192 = sbr.rel (%p190) target = $region16
      $region15: #{tpu_custom_call.1} parent=5 // pred_region
        // Predicated region
        $region17: #{tpu_custom_call.1} parent=15 // pred_check
          %p193 = pneg %p56
        $region18: #{tpu_custom_call.1} parent=15 // pred_check_branch
          %195 = sbr.rel (%p193) target = $region20
        $region19: #{tpu_custom_call.1} parent=15 // pred_region
          %s196 = sand.u32 %s46, 1
          %s197 = scalar_lea.sflag [#allocation3], %s196
          %s198 = sand.u32 %s46, 1
          %s199 = smul.addr %s198, 64
          %s200 = scalar_lea.vmem [#allocation2], %s199
          %s201 = smul.u32 4, %s29
          %s202 = smul.u32 2, %s30
          %s204 = ssub.s32 1024, 1024
          %205 = vsyncadd %s197, %s204
          %s206 = smul.addr %s201, 2
          %s207 = sadd.s32 %s202, %s206
          %s208 = smul.addr %s207, 128
          %s209 = scalar_lea.hbm %s0, %s208
          %s210 = sshll.u32 %s200, 4
          %s211 = int_to_ptr.vmem [resolvable:$true] %s210
          %216 = dma.hbm_to_vmem [thread:$0]  %s209, 1024, %s211, %s197, 256, 256, 16
        $region20: #{tpu_custom_call.1} parent=15 // pred_fallthru
          _
        // Predicated region
        $region21: #{tpu_custom_call.1} parent=15 // pred_check
          %p217 = pneg %p84
        $region22: #{tpu_custom_call.1} parent=15 // pred_check_branch
          %219 = sbr.rel (%p217) target = $region24
        $region23: #{tpu_custom_call.1} parent=15 // pred_region
          %s220 = sand.u32 %s22, 1
          %s221 = scalar_lea.sflag [#allocation6], %s220
          %s222 = sand.u32 %s74, 1
          %s223 = smul.addr %s222, 64
          %s224 = scalar_lea.vmem [#allocation5], %s223
          %s225 = smul.u32 4, %s29
          %s226 = smul.u32 2, %s30
          %s228 = ssub.s32 1024, 1024
          %229 = vsyncadd %s221, %s228
          %s230 = smul.addr %s225, 2
          %s231 = sadd.s32 %s226, %s230
          %s232 = smul.addr %s231, 128
          %s233 = scalar_lea.hbm %s1, %s232
          %s234 = sshll.u32 %s224, 4
          %s235 = int_to_ptr.vmem [resolvable:$true] %s234
          %240 = dma.hbm_to_vmem [thread:$0]  %s233, 1024, %s235, %s221, 256, 256, 16
        $region24: #{tpu_custom_call.1} parent=15 // pred_fallthru
          _
        // Predicated region
        $region25: #{tpu_custom_call.1} parent=15 // pred_check
          %p241 = pneg %p112
        $region26: #{tpu_custom_call.1} parent=15 // pred_check_branch
          %243 = sbr.rel (%p241) target = $region28
        $region27: #{tpu_custom_call.1} parent=15 // pred_region
          %s244 = sand.u32 %s22, 1
          %s245 = scalar_lea.sflag [#allocation6], %s244
          %s246 = sand.u32 %s102, 1
          %s247 = smul.addr %s246, 64
          %s248 = scalar_lea.vmem [#allocation7], %s247
          %s249 = smul.u32 4, %s29
          %s250 = smul.u32 2, %s30
          %s252 = ssub.s32 1024, 1024
          %253 = vsyncadd %s245, %s252
          %s254 = smul.addr %s249, 2
          %s255 = sadd.s32 %s250, %s254
          %s256 = smul.addr %s255, 128
          %s257 = scalar_lea.hbm %s2, %s256
          %s258 = sshll.u32 %s248, 4
          %s259 = int_to_ptr.vmem [resolvable:$true] %s258
          %264 = dma.hbm_to_vmem [thread:$0]  %s257, 1024, %s259, %s245, 256, 256, 16
        $region28: #{tpu_custom_call.1} parent=15 // pred_fallthru
          _
        // Predicated region
        $region29: #{tpu_custom_call.1} parent=15 // pred_check
          %p265 = pneg %p140
        $region30: #{tpu_custom_call.1} parent=15 // pred_check_branch
          %267 = sbr.rel (%p265) target = $region32
        $region31: #{tpu_custom_call.1} parent=15 // pred_region
          %s268 = sand.u32 %s130, 1
          %s269 = scalar_lea.sflag [#allocation9], %s268
          %s270 = sand.u32 %s130, 1
          %s271 = smul.addr %s270, 64
          %s272 = scalar_lea.vmem [#allocation8], %s271
          %s273 = smul.u32 4, %s29
          %s274 = smul.u32 2, %s30
          %s276 = ssub.s32 1024, 1024
          %277 = vsyncadd %s269, %s276
          %s278 = smul.addr %s273, 2
          %s279 = sadd.s32 %s274, %s278
          %s280 = smul.addr %s279, 128
          %s281 = scalar_lea.hbm %s3, %s280
          %s282 = sshll.u32 %s272, 4
          %s283 = int_to_ptr.vmem [resolvable:$true] %s282
          %288 = dma.hbm_to_vmem [thread:$0]  %s281, 1024, %s283, %s269, 256, 256, 16
        $region32: #{tpu_custom_call.1} parent=15 // pred_fallthru
          _
      $region16: #{tpu_custom_call.1} parent=5 // pred_fallthru
        _
      %p289 = scmp.le.s32.totalorder 1, %s22
      %p290 = scmp.lt.s32.totalorder %s22, 5
      %p291 = pnand %p289, %p290
      %p292 = pneg %p291
      // Predicated region
      $region33: #{tpu_custom_call.1} parent=5 // pred_check
        _
      $region34: #{tpu_custom_call.1} parent=5 // pred_check_branch
        %294 = sbr.rel (%p291) target = $region36
      $region35: #{tpu_custom_call.1} parent=5 // pred_region
        %s295 = ssub.s32 %s22, 1
        %s296 = sand.u32 %s49, 1
        %s297 = scalar_lea.sflag [#allocation3], %s296
        %s298 = sand.u32 %s49, 1
        %s299 = smul.addr %s298, 64
        %s300 = scalar_lea.vmem [#allocation2], %s299
        // Predicated region
        $region37: #{tpu_custom_call.1} parent=35 // pred_check
          %p301 = pneg %p62
        $region38: #{tpu_custom_call.1} parent=35 // pred_check_branch
          %303 = sbr.rel (%p301) target = $region40
        $region39: #{tpu_custom_call.1} parent=35 // pred_region
          %304 = dma.done %s297, 1024
        $region40: #{tpu_custom_call.1} parent=35 // pred_fallthru
          _
        %s305 = sand.u32 %s27, 1
        %s306 = scalar_lea.sflag [#allocation6], %s305
        %s307 = sand.u32 %s77, 1
        %s308 = smul.addr %s307, 64
        %s309 = scalar_lea.vmem [#allocation5], %s308
        // Predicated region
        $region41: #{tpu_custom_call.1} parent=35 // pred_check
          %p310 = pneg %p90
        $region42: #{tpu_custom_call.1} parent=35 // pred_check_branch
          %312 = sbr.rel (%p310) target = $region44
        $region43: #{tpu_custom_call.1} parent=35 // pred_region
          %313 = dma.done %s306, 1024
        $region44: #{tpu_custom_call.1} parent=35 // pred_fallthru
          _
        %s314 = sand.u32 %s27, 1
        %s315 = scalar_lea.sflag [#allocation6], %s314
        %s316 = sand.u32 %s105, 1
        %s317 = smul.addr %s316, 64
        %s318 = scalar_lea.vmem [#allocation7], %s317
        // Predicated region
        $region45: #{tpu_custom_call.1} parent=35 // pred_check
          %p319 = pneg %p118
        $region46: #{tpu_custom_call.1} parent=35 // pred_check_branch
          %321 = sbr.rel (%p319) target = $region48
        $region47: #{tpu_custom_call.1} parent=35 // pred_region
          %322 = dma.done %s315, 1024
        $region48: #{tpu_custom_call.1} parent=35 // pred_fallthru
          _
        %s323 = sand.u32 %s133, 1
        %s324 = scalar_lea.sflag [#allocation9], %s323
        %s325 = sand.u32 %s133, 1
        %s326 = smul.addr %s325, 64
        %s327 = scalar_lea.vmem [#allocation8], %s326
        // Predicated region
        $region49: #{tpu_custom_call.1} parent=35 // pred_check
          %p328 = pneg %p146
        $region50: #{tpu_custom_call.1} parent=35 // pred_check_branch
          %330 = sbr.rel (%p328) target = $region52
        $region51: #{tpu_custom_call.1} parent=35 // pred_region
          %331 = dma.done %s324, 1024
        $region52: #{tpu_custom_call.1} parent=35 // pred_fallthru
          _
        %s332 = sand.u32 %s49, 1
        %s333 = scalar_lea.sflag [#allocation3], %s332
        %s334 = sand.u32 %s49, 1
        %s335 = smul.addr %s334, 64
        %s336 = scalar_lea.vmem [#allocation2], %s335
        %p337 = pneg %p62
        %p338 = pneg %p59
        %s339 = sand.u32 %s27, 1
        %s340 = scalar_lea.sflag [#allocation6], %s339
        %s341 = sand.u32 %s77, 1
        %s342 = smul.addr %s341, 64
        %s343 = scalar_lea.vmem [#allocation5], %s342
        %p344 = pneg %p90
        %p345 = pneg %p87
        %s346 = sand.u32 %s27, 1
        %s347 = scalar_lea.sflag [#allocation6], %s346
        %s348 = sand.u32 %s105, 1
        %s349 = smul.addr %s348, 64
        %s350 = scalar_lea.vmem [#allocation7], %s349
        %p351 = pneg %p118
        %p352 = pneg %p115
        %s353 = sand.u32 %s133, 1
        %s354 = scalar_lea.sflag [#allocation9], %s353
        %s355 = sand.u32 %s133, 1
        %s356 = smul.addr %s355, 64
        %s357 = scalar_lea.vmem [#allocation8], %s356
        %p358 = pneg %p146
        %p359 = pneg %p143
        %p360 = pneg %p174
        %p361 = pneg %p171
        %s362 = sand.u32 %s161, 1
        %s363 = scalar_lea.sflag [#allocation4], %s362
        %s364 = sand.u32 %s161, 1
        %s365 = smul.addr %s364, 64
        %s366 = scalar_lea.vmem [#allocation10], %s365
        %s367 = smul.u32 4, %s31
        %s368 = smul.u32 2, %s32
        %s369 = smul.u32 4, %s31
        %s370 = smul.u32 2, %s32
        %s371 = smul.u32 4, %s31
        %s372 = smul.u32 2, %s32
        %s373 = smul.u32 4, %s31
        %s374 = smul.u32 2, %s32
        %s375 = smul.u32 4, %s31
        %s376 = smul.u32 2, %s32
        %v377 = vld [vmem:[%s300] sm:$0xff]
        %v378 = vld [vmem:[%s300 + $0x8] sm:$0xff]
        %v379 = vld [vmem:[%s300 + $0x10] sm:$0xff]
        %v380 = vld [vmem:[%s300 + $0x18] sm:$0xff]
        %v381 = vld [vmem:[%s300 + $0x20] sm:$0xff]
        %v382 = vld [vmem:[%s300 + $0x28] sm:$0xff]
        %v383 = vld [vmem:[%s300 + $0x30] sm:$0xff]
        %v384 = vld [vmem:[%s300 + $0x38] sm:$0xff]
        %v385 = vld [vmem:[%s309] sm:$0xff]
        %v386 = vld [vmem:[%s309 + $0x8] sm:$0xff]
        %v387 = vld [vmem:[%s309 + $0x10] sm:$0xff]
        %v388 = vld [vmem:[%s309 + $0x18] sm:$0xff]
        %v389 = vld [vmem:[%s309 + $0x20] sm:$0xff]
        %v390 = vld [vmem:[%s309 + $0x28] sm:$0xff]
        %v391 = vld [vmem:[%s309 + $0x30] sm:$0xff]
        %v392 = vld [vmem:[%s309 + $0x38] sm:$0xff]
        %v393 = vld [vmem:[%s318] sm:$0xff]
        %v394 = vld [vmem:[%s318 + $0x8] sm:$0xff]
        %v395 = vld [vmem:[%s318 + $0x10] sm:$0xff]
        %v396 = vld [vmem:[%s318 + $0x18] sm:$0xff]
        %v397 = vld [vmem:[%s318 + $0x20] sm:$0xff]
        %v398 = vld [vmem:[%s318 + $0x28] sm:$0xff]
        %v399 = vld [vmem:[%s318 + $0x30] sm:$0xff]
        %v400 = vld [vmem:[%s318 + $0x38] sm:$0xff]
        %v401 = vld [vmem:[%s327] sm:$0xff]
        %v402 = vld [vmem:[%s327 + $0x8] sm:$0xff]
        %v403 = vld [vmem:[%s327 + $0x10] sm:$0xff]
        %v404 = vld [vmem:[%s327 + $0x18] sm:$0xff]
        %v405 = vld [vmem:[%s327 + $0x20] sm:$0xff]
        %v406 = vld [vmem:[%s327 + $0x28] sm:$0xff]
        %v407 = vld [vmem:[%s327 + $0x30] sm:$0xff]
        %v408 = vld [vmem:[%s327 + $0x38] sm:$0xff]
        %vm409 = vcmp.lt.f32.partialorder %v401, 1e-08
        %vm410 = vcmp.lt.f32.partialorder %v402, 1e-08
        %vm411 = vcmp.lt.f32.partialorder %v403, 1e-08
        %vm412 = vcmp.lt.f32.partialorder %v404, 1e-08
        %vm413 = vcmp.lt.f32.partialorder %v405, 1e-08
        %vm414 = vcmp.lt.f32.partialorder %v406, 1e-08
        %vm415 = vcmp.lt.f32.partialorder %v407, 1e-08
        %vm416 = vcmp.lt.f32.partialorder %v408, 1e-08
        %v417 = vmin.f32 %v385, 1000000.0
        %v418 = vmin.f32 %v386, 1000000.0
        %v419 = vmin.f32 %v387, 1000000.0
        %v420 = vmin.f32 %v388, 1000000.0
        %v421 = vmin.f32 %v389, 1000000.0
        %v422 = vmin.f32 %v390, 1000000.0
        %v423 = vmin.f32 %v391, 1000000.0
        %v424 = vmin.f32 %v392, 1000000.0
        %v425 = vsel %vm409, %v385, %v417
        %v426 = vsel %vm410, %v386, %v418
        %v427 = vsel %vm411, %v387, %v419
        %v428 = vsel %vm412, %v388, %v420
        %v429 = vsel %vm413, %v389, %v421
        %v430 = vsel %vm414, %v390, %v422
        %v431 = vsel %vm415, %v391, %v423
        %v432 = vsel %vm416, %v392, %v424
        %v433 = vadd.f32 %v425, 1e-10
        %v434 = vadd.f32 %v426, 1e-10
        %v435 = vadd.f32 %v427, 1e-10
        %v436 = vadd.f32 %v428, 1e-10
        %v437 = vadd.f32 %v429, 1e-10
        %v438 = vadd.f32 %v430, 1e-10
        %v439 = vadd.f32 %v431, 1e-10
        %v440 = vadd.f32 %v432, 1e-10
        %v441 = vlog2.pop %v433
        %v442 = vmul.f32 %v441, 0.6931472
        %v443 = vlog2.pop %v434
        %v444 = vmul.f32 %v443, 0.6931472
        %v445 = vlog2.pop %v435
        %v446 = vmul.f32 %v445, 0.6931472
        %v447 = vlog2.pop %v436
        %v448 = vmul.f32 %v447, 0.6931472
        %v449 = vlog2.pop %v437
        %v450 = vmul.f32 %v449, 0.6931472
        %v451 = vlog2.pop %v438
        %v452 = vmul.f32 %v451, 0.6931472
        %v453 = vlog2.pop %v439
        %v454 = vmul.f32 %v453, 0.6931472
        %v455 = vlog2.pop %v440
        %v456 = vmul.f32 %v455, 0.6931472
        %v457 = vadd.f32 %v425, %v377
        %v458 = vadd.f32 %v426, %v378
        %v459 = vadd.f32 %v427, %v379
        %v460 = vadd.f32 %v428, %v380
        %v461 = vadd.f32 %v429, %v381
        %v462 = vadd.f32 %v430, %v382
        %v463 = vadd.f32 %v431, %v383
        %v464 = vadd.f32 %v432, %v384
        %v465 = vadd.f32 %v457, 1e-10
        %v466 = vadd.f32 %v458, 1e-10
        %v467 = vadd.f32 %v459, 1e-10
        %v468 = vadd.f32 %v460, 1e-10
        %v469 = vadd.f32 %v461, 1e-10
        %v470 = vadd.f32 %v462, 1e-10
        %v471 = vadd.f32 %v463, 1e-10
        %v472 = vadd.f32 %v464, 1e-10
        %v473 = vlog2.pop %v465
        %v474 = vmul.f32 %v473, 0.6931472
        %v475 = vlog2.pop %v466
        %v476 = vmul.f32 %v475, 0.6931472
        %v477 = vlog2.pop %v467
        %v478 = vmul.f32 %v477, 0.6931472
        %v479 = vlog2.pop %v468
        %v480 = vmul.f32 %v479, 0.6931472
        %v481 = vlog2.pop %v469
        %v482 = vmul.f32 %v481, 0.6931472
        %v483 = vlog2.pop %v470
        %v484 = vmul.f32 %v483, 0.6931472
        %v485 = vlog2.pop %v471
        %v486 = vmul.f32 %v485, 0.6931472
        %v487 = vlog2.pop %v472
        %v488 = vmul.f32 %v487, 0.6931472
        %v489 = vadd.f32 %v377, 1e-10
        %v490 = vadd.f32 %v378, 1e-10
        %v491 = vadd.f32 %v379, 1e-10
        %v492 = vadd.f32 %v380, 1e-10
        %v493 = vadd.f32 %v381, 1e-10
        %v494 = vadd.f32 %v382, 1e-10
        %v495 = vadd.f32 %v383, 1e-10
        %v496 = vadd.f32 %v384, 1e-10
        %v497 = vlog2.pop %v489
        %v498 = vmul.f32 %v497, 0.6931472
        %v499 = vlog2.pop %v490
        %v500 = vmul.f32 %v499, 0.6931472
        %v501 = vlog2.pop %v491
        %v502 = vmul.f32 %v501, 0.6931472
        %v503 = vlog2.pop %v492
        %v504 = vmul.f32 %v503, 0.6931472
        %v505 = vlog2.pop %v493
        %v506 = vmul.f32 %v505, 0.6931472
        %v507 = vlog2.pop %v494
        %v508 = vmul.f32 %v507, 0.6931472
        %v509 = vlog2.pop %v495
        %v510 = vmul.f32 %v509, 0.6931472
        %v511 = vlog2.pop %v496
        %v512 = vmul.f32 %v511, 0.6931472
        %v513 = vsub.f32 %v442, %v474
        %v514 = vsub.f32 %v444, %v476
        %v515 = vsub.f32 %v446, %v478
        %v516 = vsub.f32 %v448, %v480
        %v517 = vsub.f32 %v450, %v482
        %v518 = vsub.f32 %v452, %v484
        %v519 = vsub.f32 %v454, %v486
        %v520 = vsub.f32 %v456, %v488
        %v521 = vmul.f32 %v385, %v513
        %v522 = vmul.f32 %v386, %v514
        %v523 = vmul.f32 %v387, %v515
        %v524 = vmul.f32 %v388, %v516
        %v525 = vmul.f32 %v389, %v517
        %v526 = vmul.f32 %v390, %v518
        %v527 = vmul.f32 %v391, %v519
        %v528 = vmul.f32 %v392, %v520
        %v529 = vmul.f32 %v521, 1.442695
        %v530 = vpow.pop %v529
        %v531 = vmul.f32 %v522, 1.442695
        %v532 = vpow.pop %v531
        %v533 = vmul.f32 %v523, 1.442695
        %v534 = vpow.pop %v533
        %v535 = vmul.f32 %v524, 1.442695
        %v536 = vpow.pop %v535
        %v537 = vmul.f32 %v525, 1.442695
        %v538 = vpow.pop %v537
        %v539 = vmul.f32 %v526, 1.442695
        %v540 = vpow.pop %v539
        %v541 = vmul.f32 %v527, 1.442695
        %v542 = vpow.pop %v541
        %v543 = vmul.f32 %v528, 1.442695
        %v544 = vpow.pop %v543
        %v545 = vsub.f32 1.0, %v393
        %v546 = vsub.f32 1.0, %v394
        %v547 = vsub.f32 1.0, %v395
        %v548 = vsub.f32 1.0, %v396
        %v549 = vsub.f32 1.0, %v397
        %v550 = vsub.f32 1.0, %v398
        %v551 = vsub.f32 1.0, %v399
        %v552 = vsub.f32 1.0, %v400
        %v553 = vmul.f32 %v545, %v530
        %v554 = vmul.f32 %v546, %v532
        %v555 = vmul.f32 %v547, %v534
        %v556 = vmul.f32 %v548, %v536
        %v557 = vmul.f32 %v549, %v538
        %v558 = vmul.f32 %v550, %v540
        %v559 = vmul.f32 %v551, %v542
        %v560 = vmul.f32 %v552, %v544
        %v561 = vadd.f32 %v393, %v553
        %v562 = vadd.f32 %v394, %v554
        %v563 = vadd.f32 %v395, %v555
        %v564 = vadd.f32 %v396, %v556
        %v565 = vadd.f32 %v397, %v557
        %v566 = vadd.f32 %v398, %v558
        %v567 = vadd.f32 %v399, %v559
        %v568 = vadd.f32 %v400, %v560
        %v569 = vadd.f32 %v561, 1e-10
        %v570 = vadd.f32 %v562, 1e-10
        %v571 = vadd.f32 %v563, 1e-10
        %v572 = vadd.f32 %v564, 1e-10
        %v573 = vadd.f32 %v565, 1e-10
        %v574 = vadd.f32 %v566, 1e-10
        %v575 = vadd.f32 %v567, 1e-10
        %v576 = vadd.f32 %v568, 1e-10
        %v577 = vlog2.pop %v569
        %v578 = vmul.f32 %v577, 0.6931472
        %v579 = vlog2.pop %v570
        %v580 = vmul.f32 %v579, 0.6931472
        %v581 = vlog2.pop %v571
        %v582 = vmul.f32 %v581, 0.6931472
        %v583 = vlog2.pop %v572
        %v584 = vmul.f32 %v583, 0.6931472
        %v585 = vlog2.pop %v573
        %v586 = vmul.f32 %v585, 0.6931472
        %v587 = vlog2.pop %v574
        %v588 = vmul.f32 %v587, 0.6931472
        %v589 = vlog2.pop %v575
        %v590 = vmul.f32 %v589, 0.6931472
        %v591 = vlog2.pop %v576
        %v592 = vmul.f32 %v591, 0.6931472
        %v593 = vsub.f32 0.0, %v578
        %v594 = vsub.f32 0.0, %v580
        %v595 = vsub.f32 0.0, %v582
        %v596 = vsub.f32 0.0, %v584
        %v597 = vsub.f32 0.0, %v586
        %v598 = vsub.f32 0.0, %v588
        %v599 = vsub.f32 0.0, %v590
        %v600 = vsub.f32 0.0, %v592
        %v601 = vadd.f32 %v417, 1e-10
        %v602 = vadd.f32 %v418, 1e-10
        %v603 = vadd.f32 %v419, 1e-10
        %v604 = vadd.f32 %v420, 1e-10
        %v605 = vadd.f32 %v421, 1e-10
        %v606 = vadd.f32 %v422, 1e-10
        %v607 = vadd.f32 %v423, 1e-10
        %v608 = vadd.f32 %v424, 1e-10
        %v609 = vadd.f32 %v601, %v401
        %v610 = vadd.f32 %v602, %v402
        %v611 = vadd.f32 %v603, %v403
        %v612 = vadd.f32 %v604, %v404
        %v613 = vadd.f32 %v605, %v405
        %v614 = vadd.f32 %v606, %v406
        %v615 = vadd.f32 %v607, %v407
        %v616 = vadd.f32 %v608, %v408
        %v617 = vsub.f32 -6.5810614, %v442
        %v618 = vsub.f32 -6.5810614, %v444
        %v619 = vsub.f32 -6.5810614, %v446
        %v620 = vsub.f32 -6.5810614, %v448
        %v621 = vsub.f32 -6.5810614, %v450
        %v622 = vsub.f32 -6.5810614, %v452
        %v623 = vsub.f32 -6.5810614, %v454
        %v624 = vsub.f32 -6.5810614, %v456
        %v625 = vlog2.pop %v609
        %v626 = vmul.f32 %v625, 0.6931472
        %v627 = vlog2.pop %v610
        %v628 = vmul.f32 %v627, 0.6931472
        %v629 = vlog2.pop %v611
        %v630 = vmul.f32 %v629, 0.6931472
        %v631 = vlog2.pop %v612
        %v632 = vmul.f32 %v631, 0.6931472
        %v633 = vlog2.pop %v613
        %v634 = vmul.f32 %v633, 0.6931472
        %v635 = vlog2.pop %v614
        %v636 = vmul.f32 %v635, 0.6931472
        %v637 = vlog2.pop %v615
        %v638 = vmul.f32 %v637, 0.6931472
        %v639 = vlog2.pop %v616
        %v640 = vmul.f32 %v639, 0.6931472
        %v641 = vadd.f32 %v617, %v626
        %v642 = vadd.f32 %v618, %v628
        %v643 = vadd.f32 %v619, %v630
        %v644 = vadd.f32 %v620, %v632
        %v645 = vadd.f32 %v621, %v634
        %v646 = vadd.f32 %v622, %v636
        %v647 = vadd.f32 %v623, %v638
        %v648 = vadd.f32 %v624, %v640
        %v649 = vadd.f32 %v601, 0.5
        %v650 = vadd.f32 %v602, 0.5
        %v651 = vadd.f32 %v603, 0.5
        %v652 = vadd.f32 %v604, 0.5
        %v653 = vadd.f32 %v605, 0.5
        %v654 = vadd.f32 %v606, 0.5
        %v655 = vadd.f32 %v607, 0.5
        %v656 = vadd.f32 %v608, 0.5
        %v657 = vadd.f32 %v601, 7.5
        %v658 = vadd.f32 %v602, 7.5
        %v659 = vadd.f32 %v603, 7.5
        %v660 = vadd.f32 %v604, 7.5
        %v661 = vadd.f32 %v605, 7.5
        %v662 = vadd.f32 %v606, 7.5
        %v663 = vadd.f32 %v607, 7.5
        %v664 = vadd.f32 %v608, 7.5
        %v665 = vlog2.pop %v657
        %v666 = vmul.f32 %v665, 0.6931472
        %v667 = vlog2.pop %v658
        %v668 = vmul.f32 %v667, 0.6931472
        %v669 = vlog2.pop %v659
        %v670 = vmul.f32 %v669, 0.6931472
        %v671 = vlog2.pop %v660
        %v672 = vmul.f32 %v671, 0.6931472
        %v673 = vlog2.pop %v661
        %v674 = vmul.f32 %v673, 0.6931472
        %v675 = vlog2.pop %v662
        %v676 = vmul.f32 %v675, 0.6931472
        %v677 = vlog2.pop %v663
        %v678 = vmul.f32 %v677, 0.6931472
        %v679 = vlog2.pop %v664
        %v680 = vmul.f32 %v679, 0.6931472
        %v681 = vmul.f32 %v649, %v666
        %v682 = vmul.f32 %v650, %v668
        %v683 = vmul.f32 %v651, %v670
        %v684 = vmul.f32 %v652, %v672
        %v685 = vmul.f32 %v653, %v674
        %v686 = vmul.f32 %v654, %v676
        %v687 = vmul.f32 %v655, %v678
        %v688 = vmul.f32 %v656, %v680
        %v689 = vadd.f32 %v641, %v681
        %v690 = vadd.f32 %v642, %v682
        %v691 = vadd.f32 %v643, %v683
        %v692 = vadd.f32 %v644, %v684
        %v693 = vadd.f32 %v645, %v685
        %v694 = vadd.f32 %v646, %v686
        %v695 = vadd.f32 %v647, %v687
        %v696 = vadd.f32 %v648, %v688
        %v697 = vsub.f32 1.0, %v601
        %v698 = vsub.f32 1.0, %v602
        %v699 = vsub.f32 1.0, %v603
        %v700 = vsub.f32 1.0, %v604
        %v701 = vsub.f32 1.0, %v605
        %v702 = vsub.f32 1.0, %v606
        %v703 = vsub.f32 1.0, %v607
        %v704 = vsub.f32 1.0, %v608
        %v705 = vadd.f32 %v601, 1.0
        %v706 = vadd.f32 %v602, 1.0
        %v707 = vadd.f32 %v603, 1.0
        %v708 = vadd.f32 %v604, 1.0
        %v709 = vadd.f32 %v605, 1.0
        %v710 = vadd.f32 %v606, 1.0
        %v711 = vadd.f32 %v607, 1.0
        %v712 = vadd.f32 %v608, 1.0
        %v713 = vrcp.pop %v705
        %v714 = vmul.f32 %v697, %v713
        %v715 = vrcp.pop %v706
        %v716 = vmul.f32 %v698, %v715
        %v717 = vrcp.pop %v707
        %v718 = vmul.f32 %v699, %v717
        %v719 = vrcp.pop %v708
        %v720 = vmul.f32 %v700, %v719
        %v721 = vrcp.pop %v709
        %v722 = vmul.f32 %v701, %v721
        %v723 = vrcp.pop %v710
        %v724 = vmul.f32 %v702, %v723
        %v725 = vrcp.pop %v711
        %v726 = vmul.f32 %v703, %v725
        %v727 = vrcp.pop %v712
        %v728 = vmul.f32 %v704, %v727
        %v729 = vmul.f32 %v714, -0.15516736
        %v730 = vmul.f32 %v716, -0.15516736
        %v731 = vmul.f32 %v718, -0.15516736
        %v732 = vmul.f32 %v720, -0.15516736
        %v733 = vmul.f32 %v722, -0.15516736
        %v734 = vmul.f32 %v724, -0.15516736
        %v735 = vmul.f32 %v726, -0.15516736
        %v736 = vmul.f32 %v728, -0.15516736
        %v737 = vadd.f32 %v729, 0.17782617
        %v738 = vadd.f32 %v730, 0.17782617
        %v739 = vadd.f32 %v731, 0.17782617
        %v740 = vadd.f32 %v732, 0.17782617
        %v741 = vadd.f32 %v733, 0.17782617
        %v742 = vadd.f32 %v734, 0.17782617
        %v743 = vadd.f32 %v735, 0.17782617
        %v744 = vadd.f32 %v736, 0.17782617
        %v745 = vmul.f32 %v737, %v714
        %v746 = vmul.f32 %v738, %v716
        %v747 = vmul.f32 %v739, %v718
        %v748 = vmul.f32 %v740, %v720
        %v749 = vmul.f32 %v741, %v722
        %v750 = vmul.f32 %v742, %v724
        %v751 = vmul.f32 %v743, %v726
        %v752 = vmul.f32 %v744, %v728
        %v753 = vadd.f32 %v745, 0.3383826
        %v754 = vadd.f32 %v746, 0.3383826
        %v755 = vadd.f32 %v747, 0.3383826
        %v756 = vadd.f32 %v748, 0.3383826
        %v757 = vadd.f32 %v749, 0.3383826
        %v758 = vadd.f32 %v750, 0.3383826
        %v759 = vadd.f32 %v751, 0.3383826
        %v760 = vadd.f32 %v752, 0.3383826
        %v761 = vmul.f32 %v753, %v714
        %v762 = vmul.f32 %v754, %v716
        %v763 = vmul.f32 %v755, %v718
        %v764 = vmul.f32 %v756, %v720
        %v765 = vmul.f32 %v757, %v722
        %v766 = vmul.f32 %v758, %v724
        %v767 = vmul.f32 %v759, %v726
        %v768 = vmul.f32 %v760, %v728
        %v769 = vadd.f32 %v761, -0.34107956
        %v770 = vadd.f32 %v762, -0.34107956
        %v771 = vadd.f32 %v763, -0.34107956
        %v772 = vadd.f32 %v764, -0.34107956
        %v773 = vadd.f32 %v765, -0.34107956
        %v774 = vadd.f32 %v766, -0.34107956
        %v775 = vadd.f32 %v767, -0.34107956
        %v776 = vadd.f32 %v768, -0.34107956
        %v777 = vmul.f32 %v769, %v714
        %v778 = vmul.f32 %v770, %v716
        %v779 = vmul.f32 %v771, %v718
        %v780 = vmul.f32 %v772, %v720
        %v781 = vmul.f32 %v773, %v722
        %v782 = vmul.f32 %v774, %v724
        %v783 = vmul.f32 %v775, %v726
        %v784 = vmul.f32 %v776, %v728
        %v785 = vadd.f32 %v777, -0.40833846
        %v786 = vadd.f32 %v778, -0.40833846
        %v787 = vadd.f32 %v779, -0.40833846
        %v788 = vadd.f32 %v780, -0.40833846
        %v789 = vadd.f32 %v781, -0.40833846
        %v790 = vadd.f32 %v782, -0.40833846
        %v791 = vadd.f32 %v783, -0.40833846
        %v792 = vadd.f32 %v784, -0.40833846
        %v793 = vmul.f32 %v785, %v714
        %v794 = vmul.f32 %v786, %v716
        %v795 = vmul.f32 %v787, %v718
        %v796 = vmul.f32 %v788, %v720
        %v797 = vmul.f32 %v789, %v722
        %v798 = vmul.f32 %v790, %v724
        %v799 = vmul.f32 %v791, %v726
        %v800 = vmul.f32 %v792, %v728
        %v801 = vadd.f32 %v793, 0.39427587
        %v802 = vadd.f32 %v794, 0.39427587
        %v803 = vadd.f32 %v795, 0.39427587
        %v804 = vadd.f32 %v796, 0.39427587
        %v805 = vadd.f32 %v797, 0.39427587
        %v806 = vadd.f32 %v798, 0.39427587
        %v807 = vadd.f32 %v799, 0.39427587
        %v808 = vadd.f32 %v800, 0.39427587
        %v809 = vmul.f32 %v801, %v714
        %v810 = vmul.f32 %v802, %v716
        %v811 = vmul.f32 %v803, %v718
        %v812 = vmul.f32 %v804, %v720
        %v813 = vmul.f32 %v805, %v722
        %v814 = vmul.f32 %v806, %v724
        %v815 = vmul.f32 %v807, %v726
        %v816 = vmul.f32 %v808, %v728
        %v817 = vadd.f32 %v809, 0.12538798
        %v818 = vadd.f32 %v810, 0.12538798
        %v819 = vadd.f32 %v811, 0.12538798
        %v820 = vadd.f32 %v812, 0.12538798
        %v821 = vadd.f32 %v813, 0.12538798
        %v822 = vadd.f32 %v814, 0.12538798
        %v823 = vadd.f32 %v815, 0.12538798
        %v824 = vadd.f32 %v816, 0.12538798
        %v825 = vmul.f32 %v817, %v714
        %v826 = vmul.f32 %v818, %v716
        %v827 = vmul.f32 %v819, %v718
        %v828 = vmul.f32 %v820, %v720
        %v829 = vmul.f32 %v821, %v722
        %v830 = vmul.f32 %v822, %v724
        %v831 = vmul.f32 %v823, %v726
        %v832 = vmul.f32 %v824, %v728
        %v833 = vadd.f32 %v825, -0.052740164
        %v834 = vadd.f32 %v826, -0.052740164
        %v835 = vadd.f32 %v827, -0.052740164
        %v836 = vadd.f32 %v828, -0.052740164
        %v837 = vadd.f32 %v829, -0.052740164
        %v838 = vadd.f32 %v830, -0.052740164
        %v839 = vadd.f32 %v831, -0.052740164
        %v840 = vadd.f32 %v832, -0.052740164
        %v841 = vmul.f32 %v833, %v714
        %v842 = vmul.f32 %v834, %v716
        %v843 = vmul.f32 %v835, %v718
        %v844 = vmul.f32 %v836, %v720
        %v845 = vmul.f32 %v837, %v722
        %v846 = vmul.f32 %v838, %v724
        %v847 = vmul.f32 %v839, %v726
        %v848 = vmul.f32 %v840, %v728
        %v849 = vadd.f32 %v841, -0.21154417
        %v850 = vadd.f32 %v842, -0.21154417
        %v851 = vadd.f32 %v843, -0.21154417
        %v852 = vadd.f32 %v844, -0.21154417
        %v853 = vadd.f32 %v845, -0.21154417
        %v854 = vadd.f32 %v846, -0.21154417
        %v855 = vadd.f32 %v847, -0.21154417
        %v856 = vadd.f32 %v848, -0.21154417
        %v857 = vmul.f32 %v849, %v714
        %v858 = vmul.f32 %v850, %v716
        %v859 = vmul.f32 %v851, %v718
        %v860 = vmul.f32 %v852, %v720
        %v861 = vmul.f32 %v853, %v722
        %v862 = vmul.f32 %v854, %v724
        %v863 = vmul.f32 %v855, %v726
        %v864 = vmul.f32 %v856, %v728
        %v865 = vadd.f32 %v857, 0.2686543
        %v866 = vadd.f32 %v858, 0.2686543
        %v867 = vadd.f32 %v859, 0.2686543
        %v868 = vadd.f32 %v860, 0.2686543
        %v869 = vadd.f32 %v861, 0.2686543
        %v870 = vadd.f32 %v862, 0.2686543
        %v871 = vadd.f32 %v863, 0.2686543
        %v872 = vadd.f32 %v864, 0.2686543
        %v873 = vmul.f32 %v865, %v714
        %v874 = vmul.f32 %v866, %v716
        %v875 = vmul.f32 %v867, %v718
        %v876 = vmul.f32 %v868, %v720
        %v877 = vmul.f32 %v869, %v722
        %v878 = vmul.f32 %v870, %v724
        %v879 = vmul.f32 %v871, %v726
        %v880 = vmul.f32 %v872, %v728
        %v881 = vadd.f32 %v873, -0.34579977
        %v882 = vadd.f32 %v874, -0.34579977
        %v883 = vadd.f32 %v875, -0.34579977
        %v884 = vadd.f32 %v876, -0.34579977
        %v885 = vadd.f32 %v877, -0.34579977
        %v886 = vadd.f32 %v878, -0.34579977
        %v887 = vadd.f32 %v879, -0.34579977
        %v888 = vadd.f32 %v880, -0.34579977
        %v889 = vmul.f32 %v881, %v714
        %v890 = vmul.f32 %v882, %v716
        %v891 = vmul.f32 %v883, %v718
        %v892 = vmul.f32 %v884, %v720
        %v893 = vmul.f32 %v885, %v722
        %v894 = vmul.f32 %v886, %v724
        %v895 = vmul.f32 %v887, %v726
        %v896 = vmul.f32 %v888, %v728
        %v897 = vadd.f32 %v889, 0.5522512
        %v898 = vadd.f32 %v890, 0.5522512
        %v899 = vadd.f32 %v891, 0.5522512
        %v900 = vadd.f32 %v892, 0.5522512
        %v901 = vadd.f32 %v893, 0.5522512
        %v902 = vadd.f32 %v894, 0.5522512
        %v903 = vadd.f32 %v895, 0.5522512
        %v904 = vadd.f32 %v896, 0.5522512
        %v905 = vmul.f32 %v897, %v714
        %v906 = vmul.f32 %v898, %v716
        %v907 = vmul.f32 %v899, %v718
        %v908 = vmul.f32 %v900, %v720
        %v909 = vmul.f32 %v901, %v722
        %v910 = vmul.f32 %v902, %v724
        %v911 = vmul.f32 %v903, %v726
        %v912 = vmul.f32 %v904, %v728
        %v913 = vadd.f32 %v905, -0.9270766
        %v914 = vadd.f32 %v906, -0.9270766
        %v915 = vadd.f32 %v907, -0.9270766
        %v916 = vadd.f32 %v908, -0.9270766
        %v917 = vadd.f32 %v909, -0.9270766
        %v918 = vadd.f32 %v910, -0.9270766
        %v919 = vadd.f32 %v911, -0.9270766
        %v920 = vadd.f32 %v912, -0.9270766
        %v921 = vmul.f32 %v913, %v714
        %v922 = vmul.f32 %v914, %v716
        %v923 = vmul.f32 %v915, %v718
        %v924 = vmul.f32 %v916, %v720
        %v925 = vmul.f32 %v917, %v722
        %v926 = vmul.f32 %v918, %v724
        %v927 = vmul.f32 %v919, %v726
        %v928 = vmul.f32 %v920, %v728
        %v929 = vadd.f32 %v921, 1.7876068
        %v930 = vadd.f32 %v922, 1.7876068
        %v931 = vadd.f32 %v923, 1.7876068
        %v932 = vadd.f32 %v924, 1.7876068
        %v933 = vadd.f32 %v925, 1.7876068
        %v934 = vadd.f32 %v926, 1.7876068
        %v935 = vadd.f32 %v927, 1.7876068
        %v936 = vadd.f32 %v928, 1.7876068
        %v937 = vmul.f32 %v929, %v714
        %v938 = vmul.f32 %v930, %v716
        %v939 = vmul.f32 %v931, %v718
        %v940 = vmul.f32 %v932, %v720
        %v941 = vmul.f32 %v933, %v722
        %v942 = vmul.f32 %v934, %v724
        %v943 = vmul.f32 %v935, %v726
        %v944 = vmul.f32 %v936, %v728
        %v945 = vadd.f32 %v937, 4.3709655
        %v946 = vadd.f32 %v938, 4.3709655
        %v947 = vadd.f32 %v939, 4.3709655
        %v948 = vadd.f32 %v940, 4.3709655
        %v949 = vadd.f32 %v941, 4.3709655
        %v950 = vadd.f32 %v942, 4.3709655
        %v951 = vadd.f32 %v943, 4.3709655
        %v952 = vadd.f32 %v944, 4.3709655
        %v953 = vadd.f32 %v689, %v945
        %v954 = vadd.f32 %v690, %v946
        %v955 = vadd.f32 %v691, %v947
        %v956 = vadd.f32 %v692, %v948
        %v957 = vadd.f32 %v693, %v949
        %v958 = vadd.f32 %v694, %v950
        %v959 = vadd.f32 %v695, %v951
        %v960 = vadd.f32 %v696, %v952
        %v961 = vadd.f32 %v401, 0.5
        %v962 = vadd.f32 %v402, 0.5
        %v963 = vadd.f32 %v403, 0.5
        %v964 = vadd.f32 %v404, 0.5
        %v965 = vadd.f32 %v405, 0.5
        %v966 = vadd.f32 %v406, 0.5
        %v967 = vadd.f32 %v407, 0.5
        %v968 = vadd.f32 %v408, 0.5
        %v969 = vadd.f32 %v401, 7.5
        %v970 = vadd.f32 %v402, 7.5
        %v971 = vadd.f32 %v403, 7.5
        %v972 = vadd.f32 %v404, 7.5
        %v973 = vadd.f32 %v405, 7.5
        %v974 = vadd.f32 %v406, 7.5
        %v975 = vadd.f32 %v407, 7.5
        %v976 = vadd.f32 %v408, 7.5
        %v977 = vlog2.pop %v969
        %v978 = vmul.f32 %v977, 0.6931472
        %v979 = vlog2.pop %v970
        %v980 = vmul.f32 %v979, 0.6931472
        %v981 = vlog2.pop %v971
        %v982 = vmul.f32 %v981, 0.6931472
        %v983 = vlog2.pop %v972
        %v984 = vmul.f32 %v983, 0.6931472
        %v985 = vlog2.pop %v973
        %v986 = vmul.f32 %v985, 0.6931472
        %v987 = vlog2.pop %v974
        %v988 = vmul.f32 %v987, 0.6931472
        %v989 = vlog2.pop %v975
        %v990 = vmul.f32 %v989, 0.6931472
        %v991 = vlog2.pop %v976
        %v992 = vmul.f32 %v991, 0.6931472
        %v993 = vmul.f32 %v961, %v978
        %v994 = vmul.f32 %v962, %v980
        %v995 = vmul.f32 %v963, %v982
        %v996 = vmul.f32 %v964, %v984
        %v997 = vmul.f32 %v965, %v986
        %v998 = vmul.f32 %v966, %v988
        %v999 = vmul.f32 %v967, %v990
        %v1000 = vmul.f32 %v968, %v992
        %v1001 = vadd.f32 %v953, %v993
        %v1002 = vadd.f32 %v954, %v994
        %v1003 = vadd.f32 %v955, %v995
        %v1004 = vadd.f32 %v956, %v996
        %v1005 = vadd.f32 %v957, %v997
        %v1006 = vadd.f32 %v958, %v998
        %v1007 = vadd.f32 %v959, %v999
        %v1008 = vadd.f32 %v960, %v1000
        %v1009 = vsub.f32 1.0, %v401
        %v1010 = vsub.f32 1.0, %v402
        %v1011 = vsub.f32 1.0, %v403
        %v1012 = vsub.f32 1.0, %v404
        %v1013 = vsub.f32 1.0, %v405
        %v1014 = vsub.f32 1.0, %v406
        %v1015 = vsub.f32 1.0, %v407
        %v1016 = vsub.f32 1.0, %v408
        %v1017 = vadd.f32 %v401, 1.0
        %v1018 = vadd.f32 %v402, 1.0
        %v1019 = vadd.f32 %v403, 1.0
        %v1020 = vadd.f32 %v404, 1.0
        %v1021 = vadd.f32 %v405, 1.0
        %v1022 = vadd.f32 %v406, 1.0
        %v1023 = vadd.f32 %v407, 1.0
        %v1024 = vadd.f32 %v408, 1.0
        %v1025 = vrcp.pop %v1017
        %v1026 = vmul.f32 %v1009, %v1025
        %v1027 = vrcp.pop %v1018
        %v1028 = vmul.f32 %v1010, %v1027
        %v1029 = vrcp.pop %v1019
        %v1030 = vmul.f32 %v1011, %v1029
        %v1031 = vrcp.pop %v1020
        %v1032 = vmul.f32 %v1012, %v1031
        %v1033 = vrcp.pop %v1021
        %v1034 = vmul.f32 %v1013, %v1033
        %v1035 = vrcp.pop %v1022
        %v1036 = vmul.f32 %v1014, %v1035
        %v1037 = vrcp.pop %v1023
        %v1038 = vmul.f32 %v1015, %v1037
        %v1039 = vrcp.pop %v1024
        %v1040 = vmul.f32 %v1016, %v1039
        %v1041 = vmul.f32 %v1026, -0.15516736
        %v1042 = vmul.f32 %v1028, -0.15516736
        %v1043 = vmul.f32 %v1030, -0.15516736
        %v1044 = vmul.f32 %v1032, -0.15516736
        %v1045 = vmul.f32 %v1034, -0.15516736
        %v1046 = vmul.f32 %v1036, -0.15516736
        %v1047 = vmul.f32 %v1038, -0.15516736
        %v1048 = vmul.f32 %v1040, -0.15516736
        %v1049 = vadd.f32 %v1041, 0.17782617
        %v1050 = vadd.f32 %v1042, 0.17782617
        %v1051 = vadd.f32 %v1043, 0.17782617
        %v1052 = vadd.f32 %v1044, 0.17782617
        %v1053 = vadd.f32 %v1045, 0.17782617
        %v1054 = vadd.f32 %v1046, 0.17782617
        %v1055 = vadd.f32 %v1047, 0.17782617
        %v1056 = vadd.f32 %v1048, 0.17782617
        %v1057 = vmul.f32 %v1049, %v1026
        %v1058 = vmul.f32 %v1050, %v1028
        %v1059 = vmul.f32 %v1051, %v1030
        %v1060 = vmul.f32 %v1052, %v1032
        %v1061 = vmul.f32 %v1053, %v1034
        %v1062 = vmul.f32 %v1054, %v1036
        %v1063 = vmul.f32 %v1055, %v1038
        %v1064 = vmul.f32 %v1056, %v1040
        %v1065 = vadd.f32 %v1057, 0.3383826
        %v1066 = vadd.f32 %v1058, 0.3383826
        %v1067 = vadd.f32 %v1059, 0.3383826
        %v1068 = vadd.f32 %v1060, 0.3383826
        %v1069 = vadd.f32 %v1061, 0.3383826
        %v1070 = vadd.f32 %v1062, 0.3383826
        %v1071 = vadd.f32 %v1063, 0.3383826
        %v1072 = vadd.f32 %v1064, 0.3383826
        %v1073 = vmul.f32 %v1065, %v1026
        %v1074 = vmul.f32 %v1066, %v1028
        %v1075 = vmul.f32 %v1067, %v1030
        %v1076 = vmul.f32 %v1068, %v1032
        %v1077 = vmul.f32 %v1069, %v1034
        %v1078 = vmul.f32 %v1070, %v1036
        %v1079 = vmul.f32 %v1071, %v1038
        %v1080 = vmul.f32 %v1072, %v1040
        %v1081 = vadd.f32 %v1073, -0.34107956
        %v1082 = vadd.f32 %v1074, -0.34107956
        %v1083 = vadd.f32 %v1075, -0.34107956
        %v1084 = vadd.f32 %v1076, -0.34107956
        %v1085 = vadd.f32 %v1077, -0.34107956
        %v1086 = vadd.f32 %v1078, -0.34107956
        %v1087 = vadd.f32 %v1079, -0.34107956
        %v1088 = vadd.f32 %v1080, -0.34107956
        %v1089 = vmul.f32 %v1081, %v1026
        %v1090 = vmul.f32 %v1082, %v1028
        %v1091 = vmul.f32 %v1083, %v1030
        %v1092 = vmul.f32 %v1084, %v1032
        %v1093 = vmul.f32 %v1085, %v1034
        %v1094 = vmul.f32 %v1086, %v1036
        %v1095 = vmul.f32 %v1087, %v1038
        %v1096 = vmul.f32 %v1088, %v1040
        %v1097 = vadd.f32 %v1089, -0.40833846
        %v1098 = vadd.f32 %v1090, -0.40833846
        %v1099 = vadd.f32 %v1091, -0.40833846
        %v1100 = vadd.f32 %v1092, -0.40833846
        %v1101 = vadd.f32 %v1093, -0.40833846
        %v1102 = vadd.f32 %v1094, -0.40833846
        %v1103 = vadd.f32 %v1095, -0.40833846
        %v1104 = vadd.f32 %v1096, -0.40833846
        %v1105 = vmul.f32 %v1097, %v1026
        %v1106 = vmul.f32 %v1098, %v1028
        %v1107 = vmul.f32 %v1099, %v1030
        %v1108 = vmul.f32 %v1100, %v1032
        %v1109 = vmul.f32 %v1101, %v1034
        %v1110 = vmul.f32 %v1102, %v1036
        %v1111 = vmul.f32 %v1103, %v1038
        %v1112 = vmul.f32 %v1104, %v1040
        %v1113 = vadd.f32 %v1105, 0.39427587
        %v1114 = vadd.f32 %v1106, 0.39427587
        %v1115 = vadd.f32 %v1107, 0.39427587
        %v1116 = vadd.f32 %v1108, 0.39427587
        %v1117 = vadd.f32 %v1109, 0.39427587
        %v1118 = vadd.f32 %v1110, 0.39427587
        %v1119 = vadd.f32 %v1111, 0.39427587
        %v1120 = vadd.f32 %v1112, 0.39427587
        %v1121 = vmul.f32 %v1113, %v1026
        %v1122 = vmul.f32 %v1114, %v1028
        %v1123 = vmul.f32 %v1115, %v1030
        %v1124 = vmul.f32 %v1116, %v1032
        %v1125 = vmul.f32 %v1117, %v1034
        %v1126 = vmul.f32 %v1118, %v1036
        %v1127 = vmul.f32 %v1119, %v1038
        %v1128 = vmul.f32 %v1120, %v1040
        %v1129 = vadd.f32 %v1121, 0.12538798
        %v1130 = vadd.f32 %v1122, 0.12538798
        %v1131 = vadd.f32 %v1123, 0.12538798
        %v1132 = vadd.f32 %v1124, 0.12538798
        %v1133 = vadd.f32 %v1125, 0.12538798
        %v1134 = vadd.f32 %v1126, 0.12538798
        %v1135 = vadd.f32 %v1127, 0.12538798
        %v1136 = vadd.f32 %v1128, 0.12538798
        %v1137 = vmul.f32 %v1129, %v1026
        %v1138 = vmul.f32 %v1130, %v1028
        %v1139 = vmul.f32 %v1131, %v1030
        %v1140 = vmul.f32 %v1132, %v1032
        %v1141 = vmul.f32 %v1133, %v1034
        %v1142 = vmul.f32 %v1134, %v1036
        %v1143 = vmul.f32 %v1135, %v1038
        %v1144 = vmul.f32 %v1136, %v1040
        %v1145 = vadd.f32 %v1137, -0.052740164
        %v1146 = vadd.f32 %v1138, -0.052740164
        %v1147 = vadd.f32 %v1139, -0.052740164
        %v1148 = vadd.f32 %v1140, -0.052740164
        %v1149 = vadd.f32 %v1141, -0.052740164
        %v1150 = vadd.f32 %v1142, -0.052740164
        %v1151 = vadd.f32 %v1143, -0.052740164
        %v1152 = vadd.f32 %v1144, -0.052740164
        %v1153 = vmul.f32 %v1145, %v1026
        %v1154 = vmul.f32 %v1146, %v1028
        %v1155 = vmul.f32 %v1147, %v1030
        %v1156 = vmul.f32 %v1148, %v1032
        %v1157 = vmul.f32 %v1149, %v1034
        %v1158 = vmul.f32 %v1150, %v1036
        %v1159 = vmul.f32 %v1151, %v1038
        %v1160 = vmul.f32 %v1152, %v1040
        %v1161 = vadd.f32 %v1153, -0.21154417
        %v1162 = vadd.f32 %v1154, -0.21154417
        %v1163 = vadd.f32 %v1155, -0.21154417
        %v1164 = vadd.f32 %v1156, -0.21154417
        %v1165 = vadd.f32 %v1157, -0.21154417
        %v1166 = vadd.f32 %v1158, -0.21154417
        %v1167 = vadd.f32 %v1159, -0.21154417
        %v1168 = vadd.f32 %v1160, -0.21154417
        %v1169 = vmul.f32 %v1161, %v1026
        %v1170 = vmul.f32 %v1162, %v1028
        %v1171 = vmul.f32 %v1163, %v1030
        %v1172 = vmul.f32 %v1164, %v1032
        %v1173 = vmul.f32 %v1165, %v1034
        %v1174 = vmul.f32 %v1166, %v1036
        %v1175 = vmul.f32 %v1167, %v1038
        %v1176 = vmul.f32 %v1168, %v1040
        %v1177 = vadd.f32 %v1169, 0.2686543
        %v1178 = vadd.f32 %v1170, 0.2686543
        %v1179 = vadd.f32 %v1171, 0.2686543
        %v1180 = vadd.f32 %v1172, 0.2686543
        %v1181 = vadd.f32 %v1173, 0.2686543
        %v1182 = vadd.f32 %v1174, 0.2686543
        %v1183 = vadd.f32 %v1175, 0.2686543
        %v1184 = vadd.f32 %v1176, 0.2686543
        %v1185 = vmul.f32 %v1177, %v1026
        %v1186 = vmul.f32 %v1178, %v1028
        %v1187 = vmul.f32 %v1179, %v1030
        %v1188 = vmul.f32 %v1180, %v1032
        %v1189 = vmul.f32 %v1181, %v1034
        %v1190 = vmul.f32 %v1182, %v1036
        %v1191 = vmul.f32 %v1183, %v1038
        %v1192 = vmul.f32 %v1184, %v1040
        %v1193 = vadd.f32 %v1185, -0.34579977
        %v1194 = vadd.f32 %v1186, -0.34579977
        %v1195 = vadd.f32 %v1187, -0.34579977
        %v1196 = vadd.f32 %v1188, -0.34579977
        %v1197 = vadd.f32 %v1189, -0.34579977
        %v1198 = vadd.f32 %v1190, -0.34579977
        %v1199 = vadd.f32 %v1191, -0.34579977
        %v1200 = vadd.f32 %v1192, -0.34579977
        %v1201 = vmul.f32 %v1193, %v1026
        %v1202 = vmul.f32 %v1194, %v1028
        %v1203 = vmul.f32 %v1195, %v1030
        %v1204 = vmul.f32 %v1196, %v1032
        %v1205 = vmul.f32 %v1197, %v1034
        %v1206 = vmul.f32 %v1198, %v1036
        %v1207 = vmul.f32 %v1199, %v1038
        %v1208 = vmul.f32 %v1200, %v1040
        %v1209 = vadd.f32 %v1201, 0.5522512
        %v1210 = vadd.f32 %v1202, 0.5522512
        %v1211 = vadd.f32 %v1203, 0.5522512
        %v1212 = vadd.f32 %v1204, 0.5522512
        %v1213 = vadd.f32 %v1205, 0.5522512
        %v1214 = vadd.f32 %v1206, 0.5522512
        %v1215 = vadd.f32 %v1207, 0.5522512
        %v1216 = vadd.f32 %v1208, 0.5522512
        %v1217 = vmul.f32 %v1209, %v1026
        %v1218 = vmul.f32 %v1210, %v1028
        %v1219 = vmul.f32 %v1211, %v1030
        %v1220 = vmul.f32 %v1212, %v1032
        %v1221 = vmul.f32 %v1213, %v1034
        %v1222 = vmul.f32 %v1214, %v1036
        %v1223 = vmul.f32 %v1215, %v1038
        %v1224 = vmul.f32 %v1216, %v1040
        %v1225 = vadd.f32 %v1217, -0.9270766
        %v1226 = vadd.f32 %v1218, -0.9270766
        %v1227 = vadd.f32 %v1219, -0.9270766
        %v1228 = vadd.f32 %v1220, -0.9270766
        %v1229 = vadd.f32 %v1221, -0.9270766
        %v1230 = vadd.f32 %v1222, -0.9270766
        %v1231 = vadd.f32 %v1223, -0.9270766
        %v1232 = vadd.f32 %v1224, -0.9270766
        %v1233 = vmul.f32 %v1225, %v1026
        %v1234 = vmul.f32 %v1226, %v1028
        %v1235 = vmul.f32 %v1227, %v1030
        %v1236 = vmul.f32 %v1228, %v1032
        %v1237 = vmul.f32 %v1229, %v1034
        %v1238 = vmul.f32 %v1230, %v1036
        %v1239 = vmul.f32 %v1231, %v1038
        %v1240 = vmul.f32 %v1232, %v1040
        %v1241 = vadd.f32 %v1233, 1.7876068
        %v1242 = vadd.f32 %v1234, 1.7876068
        %v1243 = vadd.f32 %v1235, 1.7876068
        %v1244 = vadd.f32 %v1236, 1.7876068
        %v1245 = vadd.f32 %v1237, 1.7876068
        %v1246 = vadd.f32 %v1238, 1.7876068
        %v1247 = vadd.f32 %v1239, 1.7876068
        %v1248 = vadd.f32 %v1240, 1.7876068
        %v1249 = vmul.f32 %v1241, %v1026
        %v1250 = vmul.f32 %v1242, %v1028
        %v1251 = vmul.f32 %v1243, %v1030
        %v1252 = vmul.f32 %v1244, %v1032
        %v1253 = vmul.f32 %v1245, %v1034
        %v1254 = vmul.f32 %v1246, %v1036
        %v1255 = vmul.f32 %v1247, %v1038
        %v1256 = vmul.f32 %v1248, %v1040
        %v1257 = vadd.f32 %v1249, 4.3709655
        %v1258 = vadd.f32 %v1250, 4.3709655
        %v1259 = vadd.f32 %v1251, 4.3709655
        %v1260 = vadd.f32 %v1252, 4.3709655
        %v1261 = vadd.f32 %v1253, 4.3709655
        %v1262 = vadd.f32 %v1254, 4.3709655
        %v1263 = vadd.f32 %v1255, 4.3709655
        %v1264 = vadd.f32 %v1256, 4.3709655
        %v1265 = vadd.f32 %v1001, %v1257
        %v1266 = vadd.f32 %v1002, %v1258
        %v1267 = vadd.f32 %v1003, %v1259
        %v1268 = vadd.f32 %v1004, %v1260
        %v1269 = vadd.f32 %v1005, %v1261
        %v1270 = vadd.f32 %v1006, %v1262
        %v1271 = vadd.f32 %v1007, %v1263
        %v1272 = vadd.f32 %v1008, %v1264
        %v1273 = vadd.f32 %v609, 0.5
        %v1274 = vadd.f32 %v610, 0.5
        %v1275 = vadd.f32 %v611, 0.5
        %v1276 = vadd.f32 %v612, 0.5
        %v1277 = vadd.f32 %v613, 0.5
        %v1278 = vadd.f32 %v614, 0.5
        %v1279 = vadd.f32 %v615, 0.5
        %v1280 = vadd.f32 %v616, 0.5
        %v1281 = vadd.f32 %v609, 7.5
        %v1282 = vadd.f32 %v610, 7.5
        %v1283 = vadd.f32 %v611, 7.5
        %v1284 = vadd.f32 %v612, 7.5
        %v1285 = vadd.f32 %v613, 7.5
        %v1286 = vadd.f32 %v614, 7.5
        %v1287 = vadd.f32 %v615, 7.5
        %v1288 = vadd.f32 %v616, 7.5
        %v1289 = vlog2.pop %v1281
        %v1290 = vmul.f32 %v1289, 0.6931472
        %v1291 = vlog2.pop %v1282
        %v1292 = vmul.f32 %v1291, 0.6931472
        %v1293 = vlog2.pop %v1283
        %v1294 = vmul.f32 %v1293, 0.6931472
        %v1295 = vlog2.pop %v1284
        %v1296 = vmul.f32 %v1295, 0.6931472
        %v1297 = vlog2.pop %v1285
        %v1298 = vmul.f32 %v1297, 0.6931472
        %v1299 = vlog2.pop %v1286
        %v1300 = vmul.f32 %v1299, 0.6931472
        %v1301 = vlog2.pop %v1287
        %v1302 = vmul.f32 %v1301, 0.6931472
        %v1303 = vlog2.pop %v1288
        %v1304 = vmul.f32 %v1303, 0.6931472
        %v1305 = vmul.f32 %v1273, %v1290
        %v1306 = vmul.f32 %v1274, %v1292
        %v1307 = vmul.f32 %v1275, %v1294
        %v1308 = vmul.f32 %v1276, %v1296
        %v1309 = vmul.f32 %v1277, %v1298
        %v1310 = vmul.f32 %v1278, %v1300
        %v1311 = vmul.f32 %v1279, %v1302
        %v1312 = vmul.f32 %v1280, %v1304
        %v1313 = vsub.f32 1.0, %v609
        %v1314 = vsub.f32 1.0, %v610
        %v1315 = vsub.f32 1.0, %v611
        %v1316 = vsub.f32 1.0, %v612
        %v1317 = vsub.f32 1.0, %v613
        %v1318 = vsub.f32 1.0, %v614
        %v1319 = vsub.f32 1.0, %v615
        %v1320 = vsub.f32 1.0, %v616
        %v1321 = vadd.f32 %v609, 1.0
        %v1322 = vadd.f32 %v610, 1.0
        %v1323 = vadd.f32 %v611, 1.0
        %v1324 = vadd.f32 %v612, 1.0
        %v1325 = vadd.f32 %v613, 1.0
        %v1326 = vadd.f32 %v614, 1.0
        %v1327 = vadd.f32 %v615, 1.0
        %v1328 = vadd.f32 %v616, 1.0
        %v1329 = vrcp.pop %v1321
        %v1330 = vmul.f32 %v1313, %v1329
        %v1331 = vrcp.pop %v1322
        %v1332 = vmul.f32 %v1314, %v1331
        %v1333 = vrcp.pop %v1323
        %v1334 = vmul.f32 %v1315, %v1333
        %v1335 = vrcp.pop %v1324
        %v1336 = vmul.f32 %v1316, %v1335
        %v1337 = vrcp.pop %v1325
        %v1338 = vmul.f32 %v1317, %v1337
        %v1339 = vrcp.pop %v1326
        %v1340 = vmul.f32 %v1318, %v1339
        %v1341 = vrcp.pop %v1327
        %v1342 = vmul.f32 %v1319, %v1341
        %v1343 = vrcp.pop %v1328
        %v1344 = vmul.f32 %v1320, %v1343
        %v1345 = vmul.f32 %v1330, -0.15516736
        %v1346 = vmul.f32 %v1332, -0.15516736
        %v1347 = vmul.f32 %v1334, -0.15516736
        %v1348 = vmul.f32 %v1336, -0.15516736
        %v1349 = vmul.f32 %v1338, -0.15516736
        %v1350 = vmul.f32 %v1340, -0.15516736
        %v1351 = vmul.f32 %v1342, -0.15516736
        %v1352 = vmul.f32 %v1344, -0.15516736
        %v1353 = vadd.f32 %v1345, 0.17782617
        %v1354 = vadd.f32 %v1346, 0.17782617
        %v1355 = vadd.f32 %v1347, 0.17782617
        %v1356 = vadd.f32 %v1348, 0.17782617
        %v1357 = vadd.f32 %v1349, 0.17782617
        %v1358 = vadd.f32 %v1350, 0.17782617
        %v1359 = vadd.f32 %v1351, 0.17782617
        %v1360 = vadd.f32 %v1352, 0.17782617
        %v1361 = vmul.f32 %v1353, %v1330
        %v1362 = vmul.f32 %v1354, %v1332
        %v1363 = vmul.f32 %v1355, %v1334
        %v1364 = vmul.f32 %v1356, %v1336
        %v1365 = vmul.f32 %v1357, %v1338
        %v1366 = vmul.f32 %v1358, %v1340
        %v1367 = vmul.f32 %v1359, %v1342
        %v1368 = vmul.f32 %v1360, %v1344
        %v1369 = vadd.f32 %v1361, 0.3383826
        %v1370 = vadd.f32 %v1362, 0.3383826
        %v1371 = vadd.f32 %v1363, 0.3383826
        %v1372 = vadd.f32 %v1364, 0.3383826
        %v1373 = vadd.f32 %v1365, 0.3383826
        %v1374 = vadd.f32 %v1366, 0.3383826
        %v1375 = vadd.f32 %v1367, 0.3383826
        %v1376 = vadd.f32 %v1368, 0.3383826
        %v1377 = vmul.f32 %v1369, %v1330
        %v1378 = vmul.f32 %v1370, %v1332
        %v1379 = vmul.f32 %v1371, %v1334
        %v1380 = vmul.f32 %v1372, %v1336
        %v1381 = vmul.f32 %v1373, %v1338
        %v1382 = vmul.f32 %v1374, %v1340
        %v1383 = vmul.f32 %v1375, %v1342
        %v1384 = vmul.f32 %v1376, %v1344
        %v1385 = vadd.f32 %v1377, -0.34107956
        %v1386 = vadd.f32 %v1378, -0.34107956
        %v1387 = vadd.f32 %v1379, -0.34107956
        %v1388 = vadd.f32 %v1380, -0.34107956
        %v1389 = vadd.f32 %v1381, -0.34107956
        %v1390 = vadd.f32 %v1382, -0.34107956
        %v1391 = vadd.f32 %v1383, -0.34107956
        %v1392 = vadd.f32 %v1384, -0.34107956
        %v1393 = vmul.f32 %v1385, %v1330
        %v1394 = vmul.f32 %v1386, %v1332
        %v1395 = vmul.f32 %v1387, %v1334
        %v1396 = vmul.f32 %v1388, %v1336
        %v1397 = vmul.f32 %v1389, %v1338
        %v1398 = vmul.f32 %v1390, %v1340
        %v1399 = vmul.f32 %v1391, %v1342
        %v1400 = vmul.f32 %v1392, %v1344
        %v1401 = vadd.f32 %v1393, -0.40833846
        %v1402 = vadd.f32 %v1394, -0.40833846
        %v1403 = vadd.f32 %v1395, -0.40833846
        %v1404 = vadd.f32 %v1396, -0.40833846
        %v1405 = vadd.f32 %v1397, -0.40833846
        %v1406 = vadd.f32 %v1398, -0.40833846
        %v1407 = vadd.f32 %v1399, -0.40833846
        %v1408 = vadd.f32 %v1400, -0.40833846
        %v1409 = vmul.f32 %v1401, %v1330
        %v1410 = vmul.f32 %v1402, %v1332
        %v1411 = vmul.f32 %v1403, %v1334
        %v1412 = vmul.f32 %v1404, %v1336
        %v1413 = vmul.f32 %v1405, %v1338
        %v1414 = vmul.f32 %v1406, %v1340
        %v1415 = vmul.f32 %v1407, %v1342
        %v1416 = vmul.f32 %v1408, %v1344
        %v1417 = vadd.f32 %v1409, 0.39427587
        %v1418 = vadd.f32 %v1410, 0.39427587
        %v1419 = vadd.f32 %v1411, 0.39427587
        %v1420 = vadd.f32 %v1412, 0.39427587
        %v1421 = vadd.f32 %v1413, 0.39427587
        %v1422 = vadd.f32 %v1414, 0.39427587
        %v1423 = vadd.f32 %v1415, 0.39427587
        %v1424 = vadd.f32 %v1416, 0.39427587
        %v1425 = vmul.f32 %v1417, %v1330
        %v1426 = vmul.f32 %v1418, %v1332
        %v1427 = vmul.f32 %v1419, %v1334
        %v1428 = vmul.f32 %v1420, %v1336
        %v1429 = vmul.f32 %v1421, %v1338
        %v1430 = vmul.f32 %v1422, %v1340
        %v1431 = vmul.f32 %v1423, %v1342
        %v1432 = vmul.f32 %v1424, %v1344
        %v1433 = vadd.f32 %v1425, 0.12538798
        %v1434 = vadd.f32 %v1426, 0.12538798
        %v1435 = vadd.f32 %v1427, 0.12538798
        %v1436 = vadd.f32 %v1428, 0.12538798
        %v1437 = vadd.f32 %v1429, 0.12538798
        %v1438 = vadd.f32 %v1430, 0.12538798
        %v1439 = vadd.f32 %v1431, 0.12538798
        %v1440 = vadd.f32 %v1432, 0.12538798
        %v1441 = vmul.f32 %v1433, %v1330
        %v1442 = vmul.f32 %v1434, %v1332
        %v1443 = vmul.f32 %v1435, %v1334
        %v1444 = vmul.f32 %v1436, %v1336
        %v1445 = vmul.f32 %v1437, %v1338
        %v1446 = vmul.f32 %v1438, %v1340
        %v1447 = vmul.f32 %v1439, %v1342
        %v1448 = vmul.f32 %v1440, %v1344
        %v1449 = vadd.f32 %v1441, -0.052740164
        %v1450 = vadd.f32 %v1442, -0.052740164
        %v1451 = vadd.f32 %v1443, -0.052740164
        %v1452 = vadd.f32 %v1444, -0.052740164
        %v1453 = vadd.f32 %v1445, -0.052740164
        %v1454 = vadd.f32 %v1446, -0.052740164
        %v1455 = vadd.f32 %v1447, -0.052740164
        %v1456 = vadd.f32 %v1448, -0.052740164
        %v1457 = vmul.f32 %v1449, %v1330
        %v1458 = vmul.f32 %v1450, %v1332
        %v1459 = vmul.f32 %v1451, %v1334
        %v1460 = vmul.f32 %v1452, %v1336
        %v1461 = vmul.f32 %v1453, %v1338
        %v1462 = vmul.f32 %v1454, %v1340
        %v1463 = vmul.f32 %v1455, %v1342
        %v1464 = vmul.f32 %v1456, %v1344
        %v1465 = vadd.f32 %v1457, -0.21154417
        %v1466 = vadd.f32 %v1458, -0.21154417
        %v1467 = vadd.f32 %v1459, -0.21154417
        %v1468 = vadd.f32 %v1460, -0.21154417
        %v1469 = vadd.f32 %v1461, -0.21154417
        %v1470 = vadd.f32 %v1462, -0.21154417
        %v1471 = vadd.f32 %v1463, -0.21154417
        %v1472 = vadd.f32 %v1464, -0.21154417
        %v1473 = vmul.f32 %v1465, %v1330
        %v1474 = vmul.f32 %v1466, %v1332
        %v1475 = vmul.f32 %v1467, %v1334
        %v1476 = vmul.f32 %v1468, %v1336
        %v1477 = vmul.f32 %v1469, %v1338
        %v1478 = vmul.f32 %v1470, %v1340
        %v1479 = vmul.f32 %v1471, %v1342
        %v1480 = vmul.f32 %v1472, %v1344
        %v1481 = vadd.f32 %v1473, 0.2686543
        %v1482 = vadd.f32 %v1474, 0.2686543
        %v1483 = vadd.f32 %v1475, 0.2686543
        %v1484 = vadd.f32 %v1476, 0.2686543
        %v1485 = vadd.f32 %v1477, 0.2686543
        %v1486 = vadd.f32 %v1478, 0.2686543
        %v1487 = vadd.f32 %v1479, 0.2686543
        %v1488 = vadd.f32 %v1480, 0.2686543
        %v1489 = vmul.f32 %v1481, %v1330
        %v1490 = vmul.f32 %v1482, %v1332
        %v1491 = vmul.f32 %v1483, %v1334
        %v1492 = vmul.f32 %v1484, %v1336
        %v1493 = vmul.f32 %v1485, %v1338
        %v1494 = vmul.f32 %v1486, %v1340
        %v1495 = vmul.f32 %v1487, %v1342
        %v1496 = vmul.f32 %v1488, %v1344
        %v1497 = vadd.f32 %v1489, -0.34579977
        %v1498 = vadd.f32 %v1490, -0.34579977
        %v1499 = vadd.f32 %v1491, -0.34579977
        %v1500 = vadd.f32 %v1492, -0.34579977
        %v1501 = vadd.f32 %v1493, -0.34579977
        %v1502 = vadd.f32 %v1494, -0.34579977
        %v1503 = vadd.f32 %v1495, -0.34579977
        %v1504 = vadd.f32 %v1496, -0.34579977
        %v1505 = vmul.f32 %v1497, %v1330
        %v1506 = vmul.f32 %v1498, %v1332
        %v1507 = vmul.f32 %v1499, %v1334
        %v1508 = vmul.f32 %v1500, %v1336
        %v1509 = vmul.f32 %v1501, %v1338
        %v1510 = vmul.f32 %v1502, %v1340
        %v1511 = vmul.f32 %v1503, %v1342
        %v1512 = vmul.f32 %v1504, %v1344
        %v1513 = vadd.f32 %v1505, 0.5522512
        %v1514 = vadd.f32 %v1506, 0.5522512
        %v1515 = vadd.f32 %v1507, 0.5522512
        %v1516 = vadd.f32 %v1508, 0.5522512
        %v1517 = vadd.f32 %v1509, 0.5522512
        %v1518 = vadd.f32 %v1510, 0.5522512
        %v1519 = vadd.f32 %v1511, 0.5522512
        %v1520 = vadd.f32 %v1512, 0.5522512
        %v1521 = vmul.f32 %v1513, %v1330
        %v1522 = vmul.f32 %v1514, %v1332
        %v1523 = vmul.f32 %v1515, %v1334
        %v1524 = vmul.f32 %v1516, %v1336
        %v1525 = vmul.f32 %v1517, %v1338
        %v1526 = vmul.f32 %v1518, %v1340
        %v1527 = vmul.f32 %v1519, %v1342
        %v1528 = vmul.f32 %v1520, %v1344
        %v1529 = vadd.f32 %v1521, -0.9270766
        %v1530 = vadd.f32 %v1522, -0.9270766
        %v1531 = vadd.f32 %v1523, -0.9270766
        %v1532 = vadd.f32 %v1524, -0.9270766
        %v1533 = vadd.f32 %v1525, -0.9270766
        %v1534 = vadd.f32 %v1526, -0.9270766
        %v1535 = vadd.f32 %v1527, -0.9270766
        %v1536 = vadd.f32 %v1528, -0.9270766
        %v1537 = vmul.f32 %v1529, %v1330
        %v1538 = vmul.f32 %v1530, %v1332
        %v1539 = vmul.f32 %v1531, %v1334
        %v1540 = vmul.f32 %v1532, %v1336
        %v1541 = vmul.f32 %v1533, %v1338
        %v1542 = vmul.f32 %v1534, %v1340
        %v1543 = vmul.f32 %v1535, %v1342
        %v1544 = vmul.f32 %v1536, %v1344
        %v1545 = vadd.f32 %v1537, 1.7876068
        %v1546 = vadd.f32 %v1538, 1.7876068
        %v1547 = vadd.f32 %v1539, 1.7876068
        %v1548 = vadd.f32 %v1540, 1.7876068
        %v1549 = vadd.f32 %v1541, 1.7876068
        %v1550 = vadd.f32 %v1542, 1.7876068
        %v1551 = vadd.f32 %v1543, 1.7876068
        %v1552 = vadd.f32 %v1544, 1.7876068
        %v1553 = vmul.f32 %v1545, %v1330
        %v1554 = vmul.f32 %v1546, %v1332
        %v1555 = vmul.f32 %v1547, %v1334
        %v1556 = vmul.f32 %v1548, %v1336
        %v1557 = vmul.f32 %v1549, %v1338
        %v1558 = vmul.f32 %v1550, %v1340
        %v1559 = vmul.f32 %v1551, %v1342
        %v1560 = vmul.f32 %v1552, %v1344
        %v1561 = vadd.f32 %v1553, 4.3709655
        %v1562 = vadd.f32 %v1554, 4.3709655
        %v1563 = vadd.f32 %v1555, 4.3709655
        %v1564 = vadd.f32 %v1556, 4.3709655
        %v1565 = vadd.f32 %v1557, 4.3709655
        %v1566 = vadd.f32 %v1558, 4.3709655
        %v1567 = vadd.f32 %v1559, 4.3709655
        %v1568 = vadd.f32 %v1560, 4.3709655
        %v1569 = vadd.f32 %v1305, %v1561
        %v1570 = vadd.f32 %v1306, %v1562
        %v1571 = vadd.f32 %v1307, %v1563
        %v1572 = vadd.f32 %v1308, %v1564
        %v1573 = vadd.f32 %v1309, %v1565
        %v1574 = vadd.f32 %v1310, %v1566
        %v1575 = vadd.f32 %v1311, %v1567
        %v1576 = vadd.f32 %v1312, %v1568
        %v1577 = vsub.f32 %v1265, %v1569
        %v1578 = vsub.f32 %v1266, %v1570
        %v1579 = vsub.f32 %v1267, %v1571
        %v1580 = vsub.f32 %v1268, %v1572
        %v1581 = vsub.f32 %v1269, %v1573
        %v1582 = vsub.f32 %v1270, %v1574
        %v1583 = vsub.f32 %v1271, %v1575
        %v1584 = vsub.f32 %v1272, %v1576
        %v1585 = vadd.f32 %v417, %v401
        %v1586 = vadd.f32 %v418, %v402
        %v1587 = vadd.f32 %v419, %v403
        %v1588 = vadd.f32 %v420, %v404
        %v1589 = vadd.f32 %v421, %v405
        %v1590 = vadd.f32 %v422, %v406
        %v1591 = vadd.f32 %v423, %v407
        %v1592 = vadd.f32 %v424, %v408
        %v1593 = vsub.f32 %v474, %v442
        %v1594 = vsub.f32 %v476, %v444
        %v1595 = vsub.f32 %v478, %v446
        %v1596 = vsub.f32 %v480, %v448
        %v1597 = vsub.f32 %v482, %v450
        %v1598 = vsub.f32 %v484, %v452
        %v1599 = vsub.f32 %v486, %v454
        %v1600 = vsub.f32 %v488, %v456
        %v1601 = vmul.f32 %v1585, %v1593
        %v1602 = vmul.f32 %v1586, %v1594
        %v1603 = vmul.f32 %v1587, %v1595
        %v1604 = vmul.f32 %v1588, %v1596
        %v1605 = vmul.f32 %v1589, %v1597
        %v1606 = vmul.f32 %v1590, %v1598
        %v1607 = vmul.f32 %v1591, %v1599
        %v1608 = vmul.f32 %v1592, %v1600
        %v1609 = vsub.f32 %v442, %v498
        %v1610 = vsub.f32 %v444, %v500
        %v1611 = vsub.f32 %v446, %v502
        %v1612 = vsub.f32 %v448, %v504
        %v1613 = vsub.f32 %v450, %v506
        %v1614 = vsub.f32 %v452, %v508
        %v1615 = vsub.f32 %v454, %v510
        %v1616 = vsub.f32 %v456, %v512
        %v1617 = vmul.f32 %v401, %v1609
        %v1618 = vmul.f32 %v402, %v1610
        %v1619 = vmul.f32 %v403, %v1611
        %v1620 = vmul.f32 %v404, %v1612
        %v1621 = vmul.f32 %v405, %v1613
        %v1622 = vmul.f32 %v406, %v1614
        %v1623 = vmul.f32 %v407, %v1615
        %v1624 = vmul.f32 %v408, %v1616
        %v1625 = vadd.f32 %v1601, %v1617
        %v1626 = vadd.f32 %v1602, %v1618
        %v1627 = vadd.f32 %v1603, %v1619
        %v1628 = vadd.f32 %v1604, %v1620
        %v1629 = vadd.f32 %v1605, %v1621
        %v1630 = vadd.f32 %v1606, %v1622
        %v1631 = vadd.f32 %v1607, %v1623
        %v1632 = vadd.f32 %v1608, %v1624
        %v1633 = vadd.f32 %v1577, %v1625
        %v1634 = vadd.f32 %v1578, %v1626
        %v1635 = vadd.f32 %v1579, %v1627
        %v1636 = vadd.f32 %v1580, %v1628
        %v1637 = vadd.f32 %v1581, %v1629
        %v1638 = vadd.f32 %v1582, %v1630
        %v1639 = vadd.f32 %v1583, %v1631
        %v1640 = vadd.f32 %v1584, %v1632
        %v1641 = vsel %vm409, %v593, %v1633
        %v1642 = vsel %vm410, %v594, %v1634
        %v1643 = vsel %vm411, %v595, %v1635
        %v1644 = vsel %vm412, %v596, %v1636
        %v1645 = vsel %vm413, %v597, %v1637
        %v1646 = vsel %vm414, %v598, %v1638
        %v1647 = vsel %vm415, %v599, %v1639
        %v1648 = vsel %vm416, %v600, %v1640
        %v1649 = vmul.f32 %v393, %v393
        %v1650 = vmul.f32 %v394, %v394
        %v1651 = vmul.f32 %v395, %v395
        %v1652 = vmul.f32 %v396, %v396
        %v1653 = vmul.f32 %v397, %v397
        %v1654 = vmul.f32 %v398, %v398
        %v1655 = vmul.f32 %v399, %v399
        %v1656 = vmul.f32 %v400, %v400
        %v1657 = vmul.f32 %v1649, 0.5
        %v1658 = vmul.f32 %v1650, 0.5
        %v1659 = vmul.f32 %v1651, 0.5
        %v1660 = vmul.f32 %v1652, 0.5
        %v1661 = vmul.f32 %v1653, 0.5
        %v1662 = vmul.f32 %v1654, 0.5
        %v1663 = vmul.f32 %v1655, 0.5
        %v1664 = vmul.f32 %v1656, 0.5
        %v1665 = vadd.f32 %v1641, %v1657
        %v1666 = vadd.f32 %v1642, %v1658
        %v1667 = vadd.f32 %v1643, %v1659
        %v1668 = vadd.f32 %v1644, %v1660
        %v1669 = vadd.f32 %v1645, %v1661
        %v1670 = vadd.f32 %v1646, %v1662
        %v1671 = vadd.f32 %v1647, %v1663
        %v1672 = vadd.f32 %v1648, %v1664
        %1673 = vst [vmem:[%s366] sm:$0xff] %v1665
        %1674 = vst [vmem:[%s366 + $0x8] sm:$0xff] %v1666
        %1675 = vst [vmem:[%s366 + $0x10] sm:$0xff] %v1667
        %1676 = vst [vmem:[%s366 + $0x18] sm:$0xff] %v1668
        %1677 = vst [vmem:[%s366 + $0x20] sm:$0xff] %v1669
        %1678 = vst [vmem:[%s366 + $0x28] sm:$0xff] %v1670
        %1679 = vst [vmem:[%s366 + $0x30] sm:$0xff] %v1671
        %1680 = vst [vmem:[%s366 + $0x38] sm:$0xff] %v1672
        %s1681 = sand.u32 %s161, 1
        %s1682 = scalar_lea.sflag [#allocation4], %s1681
        %s1683 = sand.u32 %s161, 1
        %s1684 = smul.addr %s1683, 64
        %s1685 = scalar_lea.vmem [#allocation10], %s1684
        // Predicated region
        $region53: #{tpu_custom_call.1} parent=35 // pred_check
          %p1686 = pneg %p171
        $region54: #{tpu_custom_call.1} parent=35 // pred_check_branch
          %1688 = sbr.rel (%p1686) target = $region56
        $region55: #{tpu_custom_call.1} parent=35 // pred_region
          %s1689 = smul.u32 4, %s31
          %s1690 = smul.u32 2, %s32
          %s1692 = ssub.s32 1024, 1024
          %1693 = vsyncadd %s1682, %s1692
          %s1694 = smul.addr %s1689, 2
          %s1695 = sadd.s32 %s1690, %s1694
          %s1696 = smul.addr %s1695, 128
          %s1697 = scalar_lea.hbm %s4, %s1696
          %s1698 = sshll.u32 %s1685, 4
          %s1699 = int_to_ptr.vmem [resolvable:$true] %s1698
          %1704 = dma.vmem_to_hbm [thread:$0]  %s1699, 1024, %s1697, %s1682, 256, 256, 16
        $region56: #{tpu_custom_call.1} parent=35 // pred_fallthru
          _
      $region36: #{tpu_custom_call.1} parent=5 // pred_fallthru
        _
      %p1705 = scmp.le.s32.totalorder 2, %s22
      // Predicated region
      $region57: #{tpu_custom_call.1} parent=5 // pred_check
        %p1706 = pneg %p1705
      $region58: #{tpu_custom_call.1} parent=5 // pred_check_branch
        %1708 = sbr.rel (%p1706) target = $region60
      $region59: #{tpu_custom_call.1} parent=5 // pred_region
        %s1709 = ssub.s32 %s22, 2
        // Predicated region
        $region61: #{tpu_custom_call.1} parent=59 // pred_check
          %p1710 = pneg %p177
        $region62: #{tpu_custom_call.1} parent=59 // pred_check_branch
          %1712 = sbr.rel (%p1710) target = $region64
        $region63: #{tpu_custom_call.1} parent=59 // pred_region
          %s1713 = sand.u32 %s162, 1
          %s1714 = scalar_lea.sflag [#allocation4], %s1713
          %s1715 = sand.u32 %s162, 1
          %s1716 = smul.addr %s1715, 64
          %s1717 = scalar_lea.vmem [#allocation10], %s1716
          %1718 = dma.done %s1714, 1024
        $region64: #{tpu_custom_call.1} parent=59 // pred_fallthru
          _
      $region60: #{tpu_custom_call.1} parent=5 // pred_fallthru
        _
    $region6: #{tpu_custom_call.1} parent=1 // loop_footer
      %s26 = sadd.s32 1, %s22
    $region7: #{tpu_custom_call.1} parent=1 // loop_footer_branch
      %21 = sbr.rel target = $region3
    $region8: #{tpu_custom_call.1} parent=1 // loop_exit
      _
    %1719 = vsyncpa [#allocation3], 1
    %s1720 = scalar_lea.sflag [#allocation3], 1
    %1721 = vsyncpa %s1720, 1
    %1722 = vsyncpa [#allocation6], 1
    %s1723 = scalar_lea.sflag [#allocation6], 1
    %1724 = vsyncpa %s1723, 1
    %1725 = vsyncpa [#allocation9], 1
    %s1726 = scalar_lea.sflag [#allocation9], 1
    %1727 = vsyncpa %s1726, 1
    %1728 = vsyncpa [#allocation4], 1
    %s1729 = scalar_lea.sflag [#allocation4], 1
    %1730 = vsyncpa %s1729, 1

</llo_original>
